<compile_context>
chip_gen: v5e
topology: v5e:2x2
jax: 0.10.0
libtpu: 0.0.40
codegen_flags: <defaults>
</compile_context>

<pallas_src>
import jax
import jax.numpy as jnp
from jax.experimental import pallas as pl
from jax.experimental.pallas import tpu as pltpu


def vae_kernel(x_ref, eps_ref,
               w1_ref, b1_ref,      # img2hd
               wms_ref, bms_ref,    # fused hd2mean | hd2std
               w3_ref, b3_ref,      # ns2hd
               w4_ref, b4_ref,      # hd2img
               xnew_ref, ms_ref):
    noise = eps_ref.shape[-1]
    bf16 = jnp.bfloat16

    # ---- encode ----
    h = jnp.dot(x_ref[...].astype(bf16), w1_ref[...],
                preferred_element_type=jnp.float32) + b1_ref[...]
    h = jnp.maximum(h, 0.0)                                    # ReLU (f32 VPU)

    # fused mean|std projection: one lane-dense (TB, 2*noise) matmul
    ms = jnp.dot(h.astype(bf16), wms_ref[...],
                 preferred_element_type=jnp.float32) + bms_ref[...]
    ms_ref[...] = ms                       # lane-dense (128-wide) store

    # ---- reparameterize: z = mean + std * eps ----
    mean = ms[:, :noise]
    std = ms[:, noise:]
    z = mean + std * eps_ref[...]

    # ---- decode ----
    h2 = jnp.dot(z.astype(bf16), w3_ref[...],
                 preferred_element_type=jnp.float32) + b3_ref[...]
    h2 = jnp.maximum(h2, 0.0)                                  # ReLU

    logits = jnp.dot(h2.astype(bf16), w4_ref[...],
                     preferred_element_type=jnp.float32) + b4_ref[...]
    # sigmoid = 1 / (1 + exp(-x)); exp + approx reciprocal both run on the EUP
    e = jnp.exp(-logits)
    xnew_ref[...] = pl.reciprocal(1.0 + e, approx=True)


def vae_forward(x, eps, params, *, tb=128):
    """Run the fused VAE forward. Returns (x_new, mean, std)."""
    B, in_dims = x.shape
    noise = eps.shape[1]
    hd_dims = params["w1"].shape[1]
    assert B % tb == 0, "batch must be a multiple of the batch tile"

    grid = (B // tb,)

    def batch_spec(n):                       # per-grid-step batch tile
        return pl.BlockSpec((tb, n), lambda i: (i, 0))

    def const_spec(shape):                   # weights/biases stay resident
        return pl.BlockSpec(shape, lambda i: (0, 0))

    in_specs = [
        batch_spec(in_dims),                                   # x
        batch_spec(noise),                                     # eps
        const_spec(params["w1"].shape), const_spec(params["b1"].shape),
        const_spec(params["wms"].shape), const_spec(params["bms"].shape),
        const_spec(params["w3"].shape), const_spec(params["b3"].shape),
        const_spec(params["w4"].shape), const_spec(params["b4"].shape),
    ]
    out_specs = (batch_spec(in_dims), batch_spec(2 * noise))

    flops = 2 * B * (in_dims * hd_dims + hd_dims * 2 * noise
                     + noise * hd_dims + hd_dims * in_dims)
    weight_bytes = sum(int(v.size) * v.dtype.itemsize for v in params.values())
    bytes_accessed = (x.size * 4 + eps.size * 4 + weight_bytes
                      + B * in_dims * 4 + B * 2 * noise * 4)

    xnew, ms = pl.pallas_call(
        vae_kernel,
        grid=grid,
        in_specs=in_specs,
        out_specs=out_specs,
        out_shape=(
            jax.ShapeDtypeStruct((B, in_dims), jnp.float32),    # x_new
            jax.ShapeDtypeStruct((B, 2 * noise), jnp.float32),  # mean | std
        ),
        compiler_params=pltpu.CompilerParams(
            dimension_semantics=("parallel",)),   # v7x: shard batch tiles over 2 TCs
        cost_estimate=pl.CostEstimate(
            flops=flops,
            transcendentals=2 * B * in_dims,      # exp + reciprocal per output elem
            bytes_accessed=bytes_accessed),
    )(x, eps,
      params["w1"], params["b1"],
      params["wms"], params["bms"],
      params["w3"], params["b3"],
      params["w4"], params["b4"])

    mean = ms[:, :noise]
    std = ms[:, noise:]
    return xnew, mean, std


def init_params(key, in_dims, hd_dims, noise):
    """PyTorch-Linear-style init (uniform +-1/sqrt(fan_in)).
    Weights pre-transposed to (fan_in, fan_out) and stored bf16; mean/std
    projection fused by concatenation along the output axis."""
    def linear(k, fan_in, fan_out):
        kw, kb = jax.random.split(k)
        bound = 1.0 / jnp.sqrt(fan_in)
        w = jax.random.uniform(kw, (fan_in, fan_out), jnp.float32, -bound, bound)
        b = jax.random.uniform(kb, (1, fan_out), jnp.float32, -bound, bound)
        return w, b

    k1, k2, k3, k4, k5 = jax.random.split(key, 5)
    w1, b1 = linear(k1, in_dims, hd_dims)   # img2hd
    wm, bm = linear(k2, hd_dims, noise)     # hd2mean
    ws, bs = linear(k3, hd_dims, noise)     # hd2std
    w3, b3 = linear(k4, noise, hd_dims)     # ns2hd
    w4, b4 = linear(k5, hd_dims, in_dims)   # hd2img
    bf16 = jnp.bfloat16
    return dict(
        w1=w1.astype(bf16), b1=b1,
        wms=jnp.concatenate([wm, ws], axis=1).astype(bf16),   # (HD, 2*NOISE)
        bms=jnp.concatenate([bm, bs], axis=1),                # (1, 2*NOISE) f32
        w3=w3.astype(bf16), b3=b3,
        w4=w4.astype(bf16), b4=b4,
    )


def vae_reference(x, eps, p):
    """Pure-JAX reference with the same bf16-operand / f32-accumulate policy."""
    noise = eps.shape[1]

    def mm(a, w):
        return jnp.dot(a.astype(jnp.bfloat16), w,
                       preferred_element_type=jnp.float32)

    h = jnp.maximum(mm(x, p["w1"]) + p["b1"], 0.0)
    ms = mm(h, p["wms"]) + p["bms"]
    mean, std = ms[:, :noise], ms[:, noise:]
    z = mean + std * eps
    h2 = jnp.maximum(mm(z, p["w3"]) + p["b3"], 0.0)
    x_new = jax.nn.sigmoid(mm(h2, p["w4"]) + p["b4"])
    return x_new, mean, std


if __name__ == "__main__":
    # Flattened image -> hidden -> latent. Batch chosen as 2 tiles of 128 so
    # the grid actually pipelines / can shard across TCs on v7x.
    B, IN_DIMS, HD_DIMS, NOISE = 256, 256, 128, 64

    key = jax.random.PRNGKey(0)
    k_x, k_eps, k_p = jax.random.split(key, 3)

    x = jax.random.uniform(k_x, (B, IN_DIMS), jnp.float32)    # flattened image in [0,1)
    eps = jax.random.normal(k_eps, (B, NOISE), jnp.float32)   # torch.randn_like(std) analogue
    params = init_params(k_p, IN_DIMS, HD_DIMS, NOISE)

    x_new, mean, std = jax.block_until_ready(vae_forward(x, eps, params, tb=128))

    # sanity check vs pure-JAX reference (same bf16 matmul policy; x_new gets
    # a looser bound because the kernel's sigmoid uses the approx reciprocal)
    xr, mr, sr = vae_reference(x, eps, params)
    assert jnp.allclose(mean, mr, atol=5e-3, rtol=5e-3)
    assert jnp.allclose(std, sr, atol=5e-3, rtol=5e-3)
    assert jnp.allclose(x_new, xr, atol=1e-2, rtol=1e-2)

    print("KERNEL_OK")
</pallas_src>

<mosaic_0001>
module attributes {stable_mosaic.version = 11 : i64} {
  func.func @vae_kernel(%arg0: i32, %arg1: memref<128x256xf32, #tpu.memory_space<vmem>>, %arg2: memref<128x64xf32, #tpu.memory_space<vmem>>, %arg3: memref<256x128xbf16, #tpu.memory_space<vmem>>, %arg4: memref<1x128xf32, #tpu.memory_space<vmem>>, %arg5: memref<128x128xbf16, #tpu.memory_space<vmem>>, %arg6: memref<1x128xf32, #tpu.memory_space<vmem>>, %arg7: memref<64x128xbf16, #tpu.memory_space<vmem>>, %arg8: memref<1x128xf32, #tpu.memory_space<vmem>>, %arg9: memref<128x256xbf16, #tpu.memory_space<vmem>>, %arg10: memref<1x256xf32, #tpu.memory_space<vmem>>, %arg11: memref<128x256xf32, #tpu.memory_space<vmem>>, %arg12: memref<128x128xf32, #tpu.memory_space<vmem>>) attributes {dimension_semantics = [#tpu.dimension_semantics<parallel>], iteration_bounds = array<i64: 2>, scalar_prefetch = 0 : i64, scratch_operands = 0 : i64, tpu.core_type = #tpu.core_type<tc>, window_params = [{transform_indices = @transform_0, window_bounds = array<i64: 128, 256>}, {transform_indices = @transform_1, window_bounds = array<i64: 128, 64>}, {pipeline_mode = #tpu.pipeline_mode<synchronous>, transform_indices = @transform_2, window_bounds = array<i64: 256, 128>}, {pipeline_mode = #tpu.pipeline_mode<synchronous>, transform_indices = @transform_3, window_bounds = array<i64: 1, 128>}, {pipeline_mode = #tpu.pipeline_mode<synchronous>, transform_indices = @transform_4, window_bounds = array<i64: 128, 128>}, {pipeline_mode = #tpu.pipeline_mode<synchronous>, transform_indices = @transform_5, window_bounds = array<i64: 1, 128>}, {pipeline_mode = #tpu.pipeline_mode<synchronous>, transform_indices = @transform_6, window_bounds = array<i64: 64, 128>}, {pipeline_mode = #tpu.pipeline_mode<synchronous>, transform_indices = @transform_7, window_bounds = array<i64: 1, 128>}, {pipeline_mode = #tpu.pipeline_mode<synchronous>, transform_indices = @transform_8, window_bounds = array<i64: 128, 256>}, {pipeline_mode = #tpu.pipeline_mode<synchronous>, transform_indices = @transform_9, window_bounds = array<i64: 1, 256>}, {transform_indices = @transform_10, window_bounds = array<i64: 128, 256>}, {transform_indices = @transform_11, window_bounds = array<i64: 128, 128>}]} {
    %c0 = arith.constant 0 : index
    %c0_0 = arith.constant 0 : index
    %0 = vector.load %arg1[%c0, %c0_0] : memref<128x256xf32, #tpu.memory_space<vmem>>, vector<128x256xf32>
    %1 = arith.truncf %0 : vector<128x256xf32> to vector<128x256xbf16>
    %c0_1 = arith.constant 0 : index
    %c0_2 = arith.constant 0 : index
    %2 = vector.load %arg3[%c0_1, %c0_2] : memref<256x128xbf16, #tpu.memory_space<vmem>>, vector<256x128xbf16>
    %cst = arith.constant dense<0.000000e+00> : vector<128x128xf32>
    %3 = tpu.matmul %1, %2, %cst {dimension_numbers = #tpu.dot_dimension_numbers<[1], [0], [0], [1], [0, 0, 1, 1], [], []>} : vector<128x256xbf16>, vector<256x128xbf16>, vector<128x128xf32> -> vector<128x128xf32>
    %c0_3 = arith.constant 0 : index
    %c0_4 = arith.constant 0 : index
    %4 = vector.load %arg4[%c0_3, %c0_4] : memref<1x128xf32, #tpu.memory_space<vmem>>, vector<1x128xf32>
    %5 = vector.broadcast %4 : vector<1x128xf32> to vector<128x128xf32>
    %6 = arith.addf %3, %5 : vector<128x128xf32>
    %cst_5 = arith.constant 0.000000e+00 : f32
    %7 = vector.broadcast %cst_5 : f32 to vector<128x128xf32>
    %8 = arith.maximumf %6, %7 : vector<128x128xf32>
    %9 = arith.truncf %8 : vector<128x128xf32> to vector<128x128xbf16>
    %c0_6 = arith.constant 0 : index
    %c0_7 = arith.constant 0 : index
    %10 = vector.load %arg5[%c0_6, %c0_7] : memref<128x128xbf16, #tpu.memory_space<vmem>>, vector<128x128xbf16>
    %cst_8 = arith.constant dense<0.000000e+00> : vector<128x128xf32>
    %11 = tpu.matmul %9, %10, %cst_8 {dimension_numbers = #tpu.dot_dimension_numbers<[1], [0], [0], [1], [0, 0, 1, 1], [], []>} : vector<128x128xbf16>, vector<128x128xbf16>, vector<128x128xf32> -> vector<128x128xf32>
    %c0_9 = arith.constant 0 : index
    %c0_10 = arith.constant 0 : index
    %12 = vector.load %arg6[%c0_9, %c0_10] : memref<1x128xf32, #tpu.memory_space<vmem>>, vector<1x128xf32>
    %13 = vector.broadcast %12 : vector<1x128xf32> to vector<128x128xf32>
    %14 = arith.addf %11, %13 : vector<128x128xf32>
    %c0_11 = arith.constant 0 : index
    %c0_12 = arith.constant 0 : index
    %15 = vector.load %arg12[%c0_11, %c0_12] : memref<128x128xf32, #tpu.memory_space<vmem>>, vector<128x128xf32>
    tpu.vector_store %arg12[%c0_11, %c0_12], %14 {strides = array<i32>} : memref<128x128xf32, #tpu.memory_space<vmem>>, vector<128x128xf32>,
    %16 = vector.extract_strided_slice %14 {offsets = [0, 0], sizes = [128, 64], strides = [1, 1]} : vector<128x128xf32> to vector<128x64xf32>
    %17 = vector.extract_strided_slice %14 {offsets = [0, 64], sizes = [128, 64], strides = [1, 1]} : vector<128x128xf32> to vector<128x64xf32>
    %c0_13 = arith.constant 0 : index
    %c0_14 = arith.constant 0 : index
    %18 = vector.load %arg2[%c0_13, %c0_14] : memref<128x64xf32, #tpu.memory_space<vmem>>, vector<128x64xf32>
    %19 = arith.mulf %17, %18 : vector<128x64xf32>
    %20 = arith.addf %16, %19 : vector<128x64xf32>
    %21 = arith.truncf %20 : vector<128x64xf32> to vector<128x64xbf16>
    %c0_15 = arith.constant 0 : index
    %c0_16 = arith.constant 0 : index
    %22 = vector.load %arg7[%c0_15, %c0_16] : memref<64x128xbf16, #tpu.memory_space<vmem>>, vector<64x128xbf16>
    %cst_17 = arith.constant dense<0.000000e+00> : vector<128x128xf32>
    %23 = tpu.matmul %21, %22, %cst_17 {dimension_numbers = #tpu.dot_dimension_numbers<[1], [0], [0], [1], [0, 0, 1, 1], [], []>} : vector<128x64xbf16>, vector<64x128xbf16>, vector<128x128xf32> -> vector<128x128xf32>
    %c0_18 = arith.constant 0 : index
    %c0_19 = arith.constant 0 : index
    %24 = vector.load %arg8[%c0_18, %c0_19] : memref<1x128xf32, #tpu.memory_space<vmem>>, vector<1x128xf32>
    %25 = vector.broadcast %24 : vector<1x128xf32> to vector<128x128xf32>
    %26 = arith.addf %23, %25 : vector<128x128xf32>
    %cst_20 = arith.constant 0.000000e+00 : f32
    %27 = vector.broadcast %cst_20 : f32 to vector<128x128xf32>
    %28 = arith.maximumf %26, %27 : vector<128x128xf32>
    %29 = arith.truncf %28 : vector<128x128xf32> to vector<128x128xbf16>
    %c0_21 = arith.constant 0 : index
    %c0_22 = arith.constant 0 : index
    %30 = vector.load %arg9[%c0_21, %c0_22] : memref<128x256xbf16, #tpu.memory_space<vmem>>, vector<128x256xbf16>
    %cst_23 = arith.constant dense<0.000000e+00> : vector<128x256xf32>
    %31 = tpu.matmul %29, %30, %cst_23 {dimension_numbers = #tpu.dot_dimension_numbers<[1], [0], [0], [1], [0, 0, 1, 1], [], []>} : vector<128x128xbf16>, vector<128x256xbf16>, vector<128x256xf32> -> vector<128x256xf32>
    %c0_24 = arith.constant 0 : index
    %c0_25 = arith.constant 0 : index
    %32 = vector.load %arg10[%c0_24, %c0_25] : memref<1x256xf32, #tpu.memory_space<vmem>>, vector<1x256xf32>
    %33 = vector.broadcast %32 : vector<1x256xf32> to vector<128x256xf32>
    %34 = arith.addf %31, %33 : vector<128x256xf32>
    %cst_26 = arith.constant 0.000000e+00 : f32
    %35 = vector.broadcast %cst_26 : f32 to vector<128x256xf32>
    %36 = arith.subf %35, %34 : vector<128x256xf32>
    %37 = math.exp %36 : vector<128x256xf32>
    %cst_27 = arith.constant 1.000000e+00 : f32
    %38 = vector.broadcast %cst_27 : f32 to vector<128x256xf32>
    %39 = arith.addf %38, %37 : vector<128x256xf32>
    %40 = tpu.reciprocal %39 {approx = true} : vector<128x256xf32> -> vector<128x256xf32>
    %c0_28 = arith.constant 0 : index
    %c0_29 = arith.constant 0 : index
    %41 = vector.load %arg11[%c0_28, %c0_29] : memref<128x256xf32, #tpu.memory_space<vmem>>, vector<128x256xf32>
    tpu.vector_store %arg11[%c0_28, %c0_29], %40 {strides = array<i32>} : memref<128x256xf32, #tpu.memory_space<vmem>>, vector<128x256xf32>,
    return
  }
  func.func @transform_0(%arg0: i32) -> (i32, i32) {
    %c0_i32 = arith.constant 0 : i32
    %c0_i32_0 = arith.constant 0 : i32
    return %arg0, %c0_i32 : i32, i32
  }
  func.func @transform_1(%arg0: i32) -> (i32, i32) {
    %c0_i32 = arith.constant 0 : i32
    %c0_i32_0 = arith.constant 0 : i32
    return %arg0, %c0_i32 : i32, i32
  }
  func.func @transform_2(%arg0: i32) -> (i32, i32) {
    %c0_i32 = arith.constant 0 : i32
    %c0_i32_0 = arith.constant 0 : i32
    %c0_i32_1 = arith.constant 0 : i32
    return %c0_i32, %c0_i32_0 : i32, i32
  }
  func.func @transform_3(%arg0: i32) -> (i32, i32) {
    %c0_i32 = arith.constant 0 : i32
    %c0_i32_0 = arith.constant 0 : i32
    %c0_i32_1 = arith.constant 0 : i32
    return %c0_i32, %c0_i32_0 : i32, i32
  }
  func.func @transform_4(%arg0: i32) -> (i32, i32) {
    %c0_i32 = arith.constant 0 : i32
    %c0_i32_0 = arith.constant 0 : i32
    %c0_i32_1 = arith.constant 0 : i32
    return %c0_i32, %c0_i32_0 : i32, i32
  }
  func.func @transform_5(%arg0: i32) -> (i32, i32) {
    %c0_i32 = arith.constant 0 : i32
    %c0_i32_0 = arith.constant 0 : i32
    %c0_i32_1 = arith.constant 0 : i32
    return %c0_i32, %c0_i32_0 : i32, i32
  }
  func.func @transform_6(%arg0: i32) -> (i32, i32) {
    %c0_i32 = arith.constant 0 : i32
    %c0_i32_0 = arith.constant 0 : i32
    %c0_i32_1 = arith.constant 0 : i32
    return %c0_i32, %c0_i32_0 : i32, i32
  }
  func.func @transform_7(%arg0: i32) -> (i32, i32) {
    %c0_i32 = arith.constant 0 : i32
    %c0_i32_0 = arith.constant 0 : i32
    %c0_i32_1 = arith.constant 0 : i32
    return %c0_i32, %c0_i32_0 : i32, i32
  }
  func.func @transform_8(%arg0: i32) -> (i32, i32) {
    %c0_i32 = arith.constant 0 : i32
    %c0_i32_0 = arith.constant 0 : i32
    %c0_i32_1 = arith.constant 0 : i32
    return %c0_i32, %c0_i32_0 : i32, i32
  }
  func.func @transform_9(%arg0: i32) -> (i32, i32) {
    %c0_i32 = arith.constant 0 : i32
    %c0_i32_0 = arith.constant 0 : i32
    %c0_i32_1 = arith.constant 0 : i32
    return %c0_i32, %c0_i32_0 : i32, i32
  }
  func.func @transform_10(%arg0: i32) -> (i32, i32) {
    %c0_i32 = arith.constant 0 : i32
    %c0_i32_0 = arith.constant 0 : i32
    return %arg0, %c0_i32 : i32, i32
  }
  func.func @transform_11(%arg0: i32) -> (i32, i32) {
    %c0_i32 = arith.constant 0 : i32
    %c0_i32_0 = arith.constant 0 : i32
    return %arg0, %c0_i32 : i32, i32
  }
}

</mosaic_0001>

<llo_original>
// kernel: tpu_custom_call.1
$region0: #{tpu_custom_call.1}
  #allocation0 [shape = 'u32[]', space=smem, size = 0x4, offset = 0x4, fixed_abs, tag = 'smem constant byte address 0x4 - core index']
  #allocation1 [shape = 'u32[72,128]{1,0:T(1,128)}', space=vmem, size = 0x9000, scoped, tag = 'internal scratch']
  %s0 = inlined_call_operand.hbm [shape: f32[256,256], index: 0, kind: input, shape index: {}]
  %s1 = inlined_call_operand.vmem [shape: f32[256,64], index: 1, kind: input, shape index: {}]
  %s2 = inlined_call_operand.vmem [shape: bf16[256,128], index: 2, kind: input, shape index: {}]
  %s3 = inlined_call_operand.vmem [shape: f32[1,128], index: 3, kind: input, shape index: {}]
  %s4 = inlined_call_operand.vmem [shape: bf16[128,128], index: 4, kind: input, shape index: {}]
  %s5 = inlined_call_operand.vmem [shape: f32[1,128], index: 5, kind: input, shape index: {}]
  %s6 = inlined_call_operand.vmem [shape: bf16[64,128], index: 6, kind: input, shape index: {}]
  %s7 = inlined_call_operand.vmem [shape: f32[1,128], index: 7, kind: input, shape index: {}]
  %s8 = inlined_call_operand.vmem [shape: bf16[128,256], index: 8, kind: input, shape index: {}]
  %s9 = inlined_call_operand.vmem [shape: f32[1,256], index: 9, kind: input, shape index: {}]
  %s10 = inlined_call_operand.hbm [shape: f32[256,256], index: 10, kind: output, shape index: {0}]
  %s11 = inlined_call_operand.hbm [shape: f32[256,128], index: 11, kind: output, shape index: {1}]
  %12 = xla_tuple %s10, %s11
  %s13 = sld [smem:[#allocation0]]
  $region85: #{tpu_custom_call.1} parent=0
    _
  %s15 = ssub.s32 1, %s13
  %s16 = scalar_select 0, %s15, %s13
  $region1: #{tpu_custom_call.1} parent=0
    #allocation2 [shape = 'u8[262144]{0}', space=vmem, size = 0x40000, scoped, tag = 'input window, operand 0']
    #allocation3 [shape = 's32[2]{0}', space=sflag, size = 0x8, scoped, tag = 'scoped memory for tpu_custom_call.1']
    #allocation4 [shape = 's32[2]{0}', space=sflag, size = 0x8, scoped, tag = 'scoped memory for tpu_custom_call.1']
    #allocation5 [shape = 'u8[262144]{0}', space=vmem, size = 0x40000, scoped, tag = 'output window, operand 0']
    #allocation6 [shape = 'u8[131072]{0}', space=vmem, size = 0x20000, scoped, tag = 'output window, operand 1']
    #allocation7 [shape = 's32[2]{0}', space=sflag, size = 0x8, scoped, tag = 'scoped memory for tpu_custom_call.1']
    %17 = vsyncpa [#allocation3], 0
    %s18 = scalar_lea.sflag [#allocation3], 1
    %19 = vsyncpa %s18, 0
    %20 = vsyncpa [#allocation4], 0
    %s21 = scalar_lea.sflag [#allocation4], 1
    %22 = vsyncpa %s21, 0
    %23 = vsyncpa [#allocation7], 0
    %s24 = scalar_lea.sflag [#allocation7], 1
    %25 = vsyncpa %s24, 0
    loop: start=0, step=1, limit=4
    $region2: #{tpu_custom_call.1} parent=1 // loop_pre_header
      _
    $region3: #{tpu_custom_call.1} parent=1 // loop_header
      %s27 = sphi 0, %s31
      %p28 = scmp.ge.s32.totalorder %s27, 4
      %s37 = sphi 0, %s39
      %s40 = sphi 0, %s37
      %s41 = sphi 0, %s40
      %s57 = sphi 0, %s41
      %s63 = sphi 0, %s65
      %s66 = sphi 0, %s63
      %s67 = sphi 0, %s66
      %s83 = sphi 0, %s67
      %s87 = sphi 0, %s87
      %s89 = sphi 0, %s87
      %s90 = sphi 0, %s89
      %s104 = sphi 0, %s90
      %s108 = sphi 0, %s108
      %s110 = sphi 0, %s108
      %s111 = sphi 0, %s110
      %s125 = sphi 0, %s111
      %s129 = sphi 0, %s129
      %s131 = sphi 0, %s129
      %s132 = sphi 0, %s131
      %s146 = sphi 0, %s132
      %s150 = sphi 0, %s150
      %s152 = sphi 0, %s150
      %s153 = sphi 0, %s152
      %s167 = sphi 0, %s153
      %s171 = sphi 0, %s171
      %s173 = sphi 0, %s171
      %s174 = sphi 0, %s173
      %s188 = sphi 0, %s174
      %s192 = sphi 0, %s192
      %s194 = sphi 0, %s192
      %s195 = sphi 0, %s194
      %s209 = sphi 0, %s195
      %s213 = sphi 0, %s213
      %s215 = sphi 0, %s213
      %s216 = sphi 0, %s215
      %s230 = sphi 0, %s216
      %s234 = sphi 0, %s234
      %s236 = sphi 0, %s234
      %s237 = sphi 0, %s236
      %s251 = sphi 0, %s237
      %s257 = sphi 0, %s259
      %s260 = sphi 0, %s257
      %s261 = sphi 0, %s260
      %s277 = sphi 0, %s261
      %s283 = sphi 0, %s285
      %s286 = sphi 0, %s283
      %s287 = sphi 0, %s286
      %s303 = sphi 0, %s287
    $region4: #{tpu_custom_call.1} parent=1 // loop_header_branch
      %30 = sbr.rel (%p28) target = $region8
    $region5: #{tpu_custom_call.1} parent=1 // loop_body
      %s32 = ssub.s32 %s27, 1
      %s33 = ssub.s32 %s27, 2
      %s34 = sadd.s32 %s27, 1
      %s35 = ssub.s32 %s27, %s34
      %p36 = scmp.eq.s32.totalorder %s35, 0
      %s38 = sadd.s32 %s37, 1
      %s39 = scalar_select %p36, %s37, %s38
      %p42 = pneg %p36
      %p43 = scmp.eq.s32.totalorder %s27, 1
      %p44 = por %p42, %p43
      %p45 = scmp.ne.s32.totalorder %s37, %s40
      %p46 = scmp.eq.s32.totalorder %s27, 0
      %p47 = por %p45, %p46
      %p48 = scmp.ne.s32.totalorder %s37, %s40
      %p49 = scmp.eq.s32.totalorder %s32, 1
      %p50 = por %p48, %p49
      %p51 = scmp.ne.s32.totalorder %s40, %s41
      %p52 = scmp.eq.s32.totalorder %s32, 0
      %p53 = por %p51, %p52
      %p54 = scmp.ne.s32.totalorder %s40, %s41
      %p55 = scmp.eq.s32.totalorder %s33, 1
      %p56 = por %p54, %p55
      %p58 = scmp.ne.s32.totalorder %s41, %s57
      %p59 = scmp.eq.s32.totalorder %s33, 0
      %p60 = por %p58, %p59
      %s61 = ssub.s32 %s27, %s34
      %p62 = scmp.eq.s32.totalorder %s61, 0
      %s64 = sadd.s32 %s63, 1
      %s65 = scalar_select %p62, %s63, %s64
      %p68 = pneg %p62
      %p69 = scmp.eq.s32.totalorder %s27, 1
      %p70 = por %p68, %p69
      %p71 = scmp.ne.s32.totalorder %s63, %s66
      %p72 = scmp.eq.s32.totalorder %s27, 0
      %p73 = por %p71, %p72
      %p74 = scmp.ne.s32.totalorder %s63, %s66
      %p75 = scmp.eq.s32.totalorder %s32, 1
      %p76 = por %p74, %p75
      %p77 = scmp.ne.s32.totalorder %s66, %s67
      %p78 = scmp.eq.s32.totalorder %s32, 0
      %p79 = por %p77, %p78
      %p80 = scmp.ne.s32.totalorder %s66, %s67
      %p81 = scmp.eq.s32.totalorder %s33, 1
      %p82 = por %p80, %p81
      %p84 = scmp.ne.s32.totalorder %s67, %s83
      %p85 = scmp.eq.s32.totalorder %s33, 0
      %p86 = por %p84, %p85
      %s88 = sadd.s32 %s87, 1
      %p91 = scmp.eq.s32.totalorder %s27, 1
      %p92 = scmp.ne.s32.totalorder %s87, %s89
      %p93 = scmp.eq.s32.totalorder %s27, 0
      %p94 = por %p92, %p93
      %p95 = scmp.ne.s32.totalorder %s87, %s89
      %p96 = scmp.eq.s32.totalorder %s32, 1
      %p97 = por %p95, %p96
      %p98 = scmp.ne.s32.totalorder %s89, %s90
      %p99 = scmp.eq.s32.totalorder %s32, 0
      %p100 = por %p98, %p99
      %p101 = scmp.ne.s32.totalorder %s89, %s90
      %p102 = scmp.eq.s32.totalorder %s33, 1
      %p103 = por %p101, %p102
      %p105 = scmp.ne.s32.totalorder %s90, %s104
      %p106 = scmp.eq.s32.totalorder %s33, 0
      %p107 = por %p105, %p106
      %s109 = sadd.s32 %s108, 1
      %p112 = scmp.eq.s32.totalorder %s27, 1
      %p113 = scmp.ne.s32.totalorder %s108, %s110
      %p114 = scmp.eq.s32.totalorder %s27, 0
      %p115 = por %p113, %p114
      %p116 = scmp.ne.s32.totalorder %s108, %s110
      %p117 = scmp.eq.s32.totalorder %s32, 1
      %p118 = por %p116, %p117
      %p119 = scmp.ne.s32.totalorder %s110, %s111
      %p120 = scmp.eq.s32.totalorder %s32, 0
      %p121 = por %p119, %p120
      %p122 = scmp.ne.s32.totalorder %s110, %s111
      %p123 = scmp.eq.s32.totalorder %s33, 1
      %p124 = por %p122, %p123
      %p126 = scmp.ne.s32.totalorder %s111, %s125
      %p127 = scmp.eq.s32.totalorder %s33, 0
      %p128 = por %p126, %p127
      %s130 = sadd.s32 %s129, 1
      %p133 = scmp.eq.s32.totalorder %s27, 1
      %p134 = scmp.ne.s32.totalorder %s129, %s131
      %p135 = scmp.eq.s32.totalorder %s27, 0
      %p136 = por %p134, %p135
      %p137 = scmp.ne.s32.totalorder %s129, %s131
      %p138 = scmp.eq.s32.totalorder %s32, 1
      %p139 = por %p137, %p138
      %p140 = scmp.ne.s32.totalorder %s131, %s132
      %p141 = scmp.eq.s32.totalorder %s32, 0
      %p142 = por %p140, %p141
      %p143 = scmp.ne.s32.totalorder %s131, %s132
      %p144 = scmp.eq.s32.totalorder %s33, 1
      %p145 = por %p143, %p144
      %p147 = scmp.ne.s32.totalorder %s132, %s146
      %p148 = scmp.eq.s32.totalorder %s33, 0
      %p149 = por %p147, %p148
      %s151 = sadd.s32 %s150, 1
      %p154 = scmp.eq.s32.totalorder %s27, 1
      %p155 = scmp.ne.s32.totalorder %s150, %s152
      %p156 = scmp.eq.s32.totalorder %s27, 0
      %p157 = por %p155, %p156
      %p158 = scmp.ne.s32.totalorder %s150, %s152
      %p159 = scmp.eq.s32.totalorder %s32, 1
      %p160 = por %p158, %p159
      %p161 = scmp.ne.s32.totalorder %s152, %s153
      %p162 = scmp.eq.s32.totalorder %s32, 0
      %p163 = por %p161, %p162
      %p164 = scmp.ne.s32.totalorder %s152, %s153
      %p165 = scmp.eq.s32.totalorder %s33, 1
      %p166 = por %p164, %p165
      %p168 = scmp.ne.s32.totalorder %s153, %s167
      %p169 = scmp.eq.s32.totalorder %s33, 0
      %p170 = por %p168, %p169
      %s172 = sadd.s32 %s171, 1
      %p175 = scmp.eq.s32.totalorder %s27, 1
      %p176 = scmp.ne.s32.totalorder %s171, %s173
      %p177 = scmp.eq.s32.totalorder %s27, 0
      %p178 = por %p176, %p177
      %p179 = scmp.ne.s32.totalorder %s171, %s173
      %p180 = scmp.eq.s32.totalorder %s32, 1
      %p181 = por %p179, %p180
      %p182 = scmp.ne.s32.totalorder %s173, %s174
      %p183 = scmp.eq.s32.totalorder %s32, 0
      %p184 = por %p182, %p183
      %p185 = scmp.ne.s32.totalorder %s173, %s174
      %p186 = scmp.eq.s32.totalorder %s33, 1
      %p187 = por %p185, %p186
      %p189 = scmp.ne.s32.totalorder %s174, %s188
      %p190 = scmp.eq.s32.totalorder %s33, 0
      %p191 = por %p189, %p190
      %s193 = sadd.s32 %s192, 1
      %p196 = scmp.eq.s32.totalorder %s27, 1
      %p197 = scmp.ne.s32.totalorder %s192, %s194
      %p198 = scmp.eq.s32.totalorder %s27, 0
      %p199 = por %p197, %p198
      %p200 = scmp.ne.s32.totalorder %s192, %s194
      %p201 = scmp.eq.s32.totalorder %s32, 1
      %p202 = por %p200, %p201
      %p203 = scmp.ne.s32.totalorder %s194, %s195
      %p204 = scmp.eq.s32.totalorder %s32, 0
      %p205 = por %p203, %p204
      %p206 = scmp.ne.s32.totalorder %s194, %s195
      %p207 = scmp.eq.s32.totalorder %s33, 1
      %p208 = por %p206, %p207
      %p210 = scmp.ne.s32.totalorder %s195, %s209
      %p211 = scmp.eq.s32.totalorder %s33, 0
      %p212 = por %p210, %p211
      %s214 = sadd.s32 %s213, 1
      %p217 = scmp.eq.s32.totalorder %s27, 1
      %p218 = scmp.ne.s32.totalorder %s213, %s215
      %p219 = scmp.eq.s32.totalorder %s27, 0
      %p220 = por %p218, %p219
      %p221 = scmp.ne.s32.totalorder %s213, %s215
      %p222 = scmp.eq.s32.totalorder %s32, 1
      %p223 = por %p221, %p222
      %p224 = scmp.ne.s32.totalorder %s215, %s216
      %p225 = scmp.eq.s32.totalorder %s32, 0
      %p226 = por %p224, %p225
      %p227 = scmp.ne.s32.totalorder %s215, %s216
      %p228 = scmp.eq.s32.totalorder %s33, 1
      %p229 = por %p227, %p228
      %p231 = scmp.ne.s32.totalorder %s216, %s230
      %p232 = scmp.eq.s32.totalorder %s33, 0
      %p233 = por %p231, %p232
      %s235 = sadd.s32 %s234, 1
      %p238 = scmp.eq.s32.totalorder %s27, 1
      %p239 = scmp.ne.s32.totalorder %s234, %s236
      %p240 = scmp.eq.s32.totalorder %s27, 0
      %p241 = por %p239, %p240
      %p242 = scmp.ne.s32.totalorder %s234, %s236
      %p243 = scmp.eq.s32.totalorder %s32, 1
      %p244 = por %p242, %p243
      %p245 = scmp.ne.s32.totalorder %s236, %s237
      %p246 = scmp.eq.s32.totalorder %s32, 0
      %p247 = por %p245, %p246
      %p248 = scmp.ne.s32.totalorder %s236, %s237
      %p249 = scmp.eq.s32.totalorder %s33, 1
      %p250 = por %p248, %p249
      %p252 = scmp.ne.s32.totalorder %s237, %s251
      %p253 = scmp.eq.s32.totalorder %s33, 0
      %p254 = por %p252, %p253
      %s255 = ssub.s32 %s27, %s34
      %p256 = scmp.eq.s32.totalorder %s255, 0
      %s258 = sadd.s32 %s257, 1
      %s259 = scalar_select %p256, %s257, %s258
      %p262 = pneg %p256
      %p263 = scmp.eq.s32.totalorder %s27, 1
      %p264 = por %p262, %p263
      %p265 = scmp.ne.s32.totalorder %s257, %s260
      %p266 = scmp.eq.s32.totalorder %s27, 0
      %p267 = por %p265, %p266
      %p268 = scmp.ne.s32.totalorder %s257, %s260
      %p269 = scmp.eq.s32.totalorder %s32, 1
      %p270 = por %p268, %p269
      %p271 = scmp.ne.s32.totalorder %s260, %s261
      %p272 = scmp.eq.s32.totalorder %s32, 0
      %p273 = por %p271, %p272
      %p274 = scmp.ne.s32.totalorder %s260, %s261
      %p275 = scmp.eq.s32.totalorder %s33, 1
      %p276 = por %p274, %p275
      %p278 = scmp.ne.s32.totalorder %s261, %s277
      %p279 = scmp.eq.s32.totalorder %s33, 0
      %p280 = por %p278, %p279
      %s281 = ssub.s32 %s27, %s34
      %p282 = scmp.eq.s32.totalorder %s281, 0
      %s284 = sadd.s32 %s283, 1
      %s285 = scalar_select %p282, %s283, %s284
      %p288 = pneg %p282
      %p289 = scmp.eq.s32.totalorder %s27, 1
      %p290 = por %p288, %p289
      %p291 = scmp.ne.s32.totalorder %s283, %s286
      %p292 = scmp.eq.s32.totalorder %s27, 0
      %p293 = por %p291, %p292
      %p294 = scmp.ne.s32.totalorder %s283, %s286
      %p295 = scmp.eq.s32.totalorder %s32, 1
      %p296 = por %p294, %p295
      %p297 = scmp.ne.s32.totalorder %s286, %s287
      %p298 = scmp.eq.s32.totalorder %s32, 0
      %p299 = por %p297, %p298
      %p300 = scmp.ne.s32.totalorder %s286, %s287
      %p301 = scmp.eq.s32.totalorder %s33, 1
      %p302 = por %p300, %p301
      %p304 = scmp.ne.s32.totalorder %s287, %s303
      %p305 = scmp.eq.s32.totalorder %s33, 0
      %p306 = por %p304, %p305
      %p307 = scmp.le.s32.totalorder 1, %s27
      %p308 = scmp.lt.s32.totalorder %s27, 3
      %p309 = pnand %p307, %p308
      %p310 = pneg %p309
      // Predicated region
      $region9: #{tpu_custom_call.1} parent=5 // pred_check
        _
      $region10: #{tpu_custom_call.1} parent=5 // pred_check_branch
        %312 = sbr.rel (%p309) target = $region12
      $region11: #{tpu_custom_call.1} parent=5 // pred_region
        %s313 = ssub.s32 %s27, 1
        // Predicated region
        $region13: #{tpu_custom_call.1} parent=11 // pred_check
          %p314 = pneg %p100
        $region14: #{tpu_custom_call.1} parent=11 // pred_check_branch
          %316 = sbr.rel (%p314) target = $region16
        $region15: #{tpu_custom_call.1} parent=11 // pred_region
          _
        $region16: #{tpu_custom_call.1} parent=11 // pred_fallthru
          _
        // Predicated region
        $region17: #{tpu_custom_call.1} parent=11 // pred_check
          %p317 = pneg %p121
        $region18: #{tpu_custom_call.1} parent=11 // pred_check_branch
          %319 = sbr.rel (%p317) target = $region20
        $region19: #{tpu_custom_call.1} parent=11 // pred_region
          _
        $region20: #{tpu_custom_call.1} parent=11 // pred_fallthru
          _
        // Predicated region
        $region21: #{tpu_custom_call.1} parent=11 // pred_check
          %p320 = pneg %p142
        $region22: #{tpu_custom_call.1} parent=11 // pred_check_branch
          %322 = sbr.rel (%p320) target = $region24
        $region23: #{tpu_custom_call.1} parent=11 // pred_region
          _
        $region24: #{tpu_custom_call.1} parent=11 // pred_fallthru
          _
        // Predicated region
        $region25: #{tpu_custom_call.1} parent=11 // pred_check
          %p323 = pneg %p163
        $region26: #{tpu_custom_call.1} parent=11 // pred_check_branch
          %325 = sbr.rel (%p323) target = $region28
        $region27: #{tpu_custom_call.1} parent=11 // pred_region
          _
        $region28: #{tpu_custom_call.1} parent=11 // pred_fallthru
          _
        // Predicated region
        $region29: #{tpu_custom_call.1} parent=11 // pred_check
          %p326 = pneg %p184
        $region30: #{tpu_custom_call.1} parent=11 // pred_check_branch
          %328 = sbr.rel (%p326) target = $region32
        $region31: #{tpu_custom_call.1} parent=11 // pred_region
          _
        $region32: #{tpu_custom_call.1} parent=11 // pred_fallthru
          _
        // Predicated region
        $region33: #{tpu_custom_call.1} parent=11 // pred_check
          %p329 = pneg %p205
        $region34: #{tpu_custom_call.1} parent=11 // pred_check_branch
          %331 = sbr.rel (%p329) target = $region36
        $region35: #{tpu_custom_call.1} parent=11 // pred_region
          _
        $region36: #{tpu_custom_call.1} parent=11 // pred_fallthru
          _
        // Predicated region
        $region37: #{tpu_custom_call.1} parent=11 // pred_check
          %p332 = pneg %p226
        $region38: #{tpu_custom_call.1} parent=11 // pred_check_branch
          %334 = sbr.rel (%p332) target = $region40
        $region39: #{tpu_custom_call.1} parent=11 // pred_region
          _
        $region40: #{tpu_custom_call.1} parent=11 // pred_fallthru
          _
        // Predicated region
        $region41: #{tpu_custom_call.1} parent=11 // pred_check
          %p335 = pneg %p247
        $region42: #{tpu_custom_call.1} parent=11 // pred_check_branch
          %337 = sbr.rel (%p335) target = $region44
        $region43: #{tpu_custom_call.1} parent=11 // pred_region
          _
        $region44: #{tpu_custom_call.1} parent=11 // pred_fallthru
          _
      $region12: #{tpu_custom_call.1} parent=5 // pred_fallthru
        _
      %p338 = scmp.lt.s32.totalorder %s27, 2
      // Predicated region
      $region45: #{tpu_custom_call.1} parent=5 // pred_check
        %p339 = pneg %p338
      $region46: #{tpu_custom_call.1} parent=5 // pred_check_branch
        %341 = sbr.rel (%p339) target = $region48
      $region47: #{tpu_custom_call.1} parent=5 // pred_region
        // Predicated region
        $region49: #{tpu_custom_call.1} parent=47 // pred_check
          %p342 = pneg %p47
        $region50: #{tpu_custom_call.1} parent=47 // pred_check_branch
          %344 = sbr.rel (%p342) target = $region52
        $region51: #{tpu_custom_call.1} parent=47 // pred_region
          %s345 = sand.u32 %s37, 1
          %s346 = scalar_lea.sflag [#allocation3], %s345
          %s347 = sand.u32 %s37, 1
          %s348 = smul.addr %s347, 256
          %s349 = scalar_lea.vmem [#allocation2], %s348
          %s350 = smul.u32 16, %s27
          %352 = vsyncadd %s346, 0
          %s353 = smul.addr %s350, 2
          %s354 = smul.addr %s353, 8
          %s355 = scalar_lea.hbm %s0, %s354
          %s356 = sshll.u32 %s355, 4
          %s357 = int_to_ptr.hbm [resolvable:$true] %s356
          %s358 = sshll.u32 %s349, 4
          %s359 = int_to_ptr.vmem [resolvable:$true] %s358
          %364 = dma.hbm_to_vmem [thread:$0]  %s357, 4096, %s359, %s346, 256, 256, 16
        $region52: #{tpu_custom_call.1} parent=47 // pred_fallthru
          _
        // Predicated region
        $region53: #{tpu_custom_call.1} parent=47 // pred_check
          %p365 = pneg %p73
        $region54: #{tpu_custom_call.1} parent=47 // pred_check_branch
          %367 = sbr.rel (%p365) target = $region56
        $region55: #{tpu_custom_call.1} parent=47 // pred_region
          %s368 = smul.u32 16, %s27
          %p369 = scmp.lt.s32.totalorder %s368, 31
          %s370 = scalar_select %p369, %s368, 31
          %s371 = smul.addr %s370, 8
          %s372 = scalar_lea.vmem %s1, %s371
          %s373 = smul.u32 16, %s27
        $region56: #{tpu_custom_call.1} parent=47 // pred_fallthru
          _
      $region48: #{tpu_custom_call.1} parent=5 // pred_fallthru
        _
      %p374 = scmp.le.s32.totalorder 1, %s27
      %p375 = scmp.lt.s32.totalorder %s27, 3
      %p376 = pnand %p374, %p375
      %p377 = pneg %p376
      // Predicated region
      $region57: #{tpu_custom_call.1} parent=5 // pred_check
        _
      $region58: #{tpu_custom_call.1} parent=5 // pred_check_branch
        %379 = sbr.rel (%p376) target = $region60
      $region59: #{tpu_custom_call.1} parent=5 // pred_region
        %s380 = ssub.s32 %s27, 1
        %s381 = sand.u32 %s40, 1
        %s382 = scalar_lea.sflag [#allocation3], %s381
        %s383 = sand.u32 %s40, 1
        %s384 = smul.addr %s383, 256
        %s385 = scalar_lea.vmem [#allocation2], %s384
        // Predicated region
        $region61: #{tpu_custom_call.1} parent=59 // pred_check
          %p386 = pneg %p53
        $region62: #{tpu_custom_call.1} parent=59 // pred_check_branch
          %388 = sbr.rel (%p386) target = $region64
        $region63: #{tpu_custom_call.1} parent=59 // pred_region
          %390 = dma.done %s382, 4096
        $region64: #{tpu_custom_call.1} parent=59 // pred_fallthru
          _
        %s391 = sand.u32 %s40, 1
        %s392 = scalar_lea.sflag [#allocation3], %s391
        %s393 = sand.u32 %s40, 1
        %s394 = smul.addr %s393, 256
        %s395 = scalar_lea.vmem [#allocation2], %s394
        %p396 = pneg %p53
        %p397 = pneg %p50
        %s398 = smul.u32 16, %s32
        %p399 = scmp.lt.s32.totalorder %s398, 31
        %s400 = scalar_select %p399, %s398, 31
        %s401 = smul.addr %s400, 8
        %s402 = scalar_lea.vmem %s1, %s401
        %p403 = pneg %p79
        %p404 = pneg %p76
        %p405 = pneg %p100
        %p406 = pneg %p97
        %p407 = pneg %p121
        %p408 = pneg %p118
        %p409 = pneg %p142
        %p410 = pneg %p139
        %p411 = pneg %p163
        %p412 = pneg %p160
        %p413 = pneg %p184
        %p414 = pneg %p181
        %p415 = pneg %p205
        %p416 = pneg %p202
        %p417 = pneg %p226
        %p418 = pneg %p223
        %p419 = pneg %p247
        %p420 = pneg %p244
        %p421 = pneg %p273
        %p422 = pneg %p270
        %s423 = sand.u32 %s260, 1
        %s424 = scalar_lea.sflag [#allocation4], %s423
        %s425 = sand.u32 %s260, 1
        %s426 = smul.addr %s425, 256
        %s427 = scalar_lea.vmem [#allocation5], %s426
        %p428 = pneg %p299
        %p429 = pneg %p296
        %s430 = sand.u32 %s286, 1
        %s431 = scalar_lea.sflag [#allocation7], %s430
        %s432 = sand.u32 %s286, 1
        %s433 = smul.addr %s432, 128
        %s434 = scalar_lea.vmem [#allocation6], %s433
        %s435 = smul.u32 16, %s32
        %s436 = smul.u32 16, %s32
        %p437 = scmp.lt.s32.totalorder %s436, 31
        %s438 = scalar_select %p437, %s436, 31
        %s439 = smul.addr %s438, 8
        %s440 = scalar_lea.vmem %s1, %s439
        %s441 = smul.u32 16, %s32
        %s442 = smul.u32 16, %s32
        %s443 = smul.u32 16, %s32
        %v445 = vld [vmem:[%s385] sm:$0xff]
        %v446 = vld [vmem:[%s385 + $0x8] sm:$0xff]
        %v447 = vld [vmem:[%s385 + $0x10] sm:$0xff]
        %v448 = vld [vmem:[%s385 + $0x18] sm:$0xff]
        %v449 = vld [vmem:[%s385 + $0x20] sm:$0xff]
        %v450 = vld [vmem:[%s385 + $0x28] sm:$0xff]
        %v451 = vld [vmem:[%s385 + $0x30] sm:$0xff]
        %v452 = vld [vmem:[%s385 + $0x38] sm:$0xff]
        %v453 = vld [vmem:[%s385 + $0x40] sm:$0xff]
        %v454 = vld [vmem:[%s385 + $0x48] sm:$0xff]
        %v455 = vld [vmem:[%s385 + $0x50] sm:$0xff]
        %v456 = vld [vmem:[%s385 + $0x58] sm:$0xff]
        %v457 = vld [vmem:[%s385 + $0x60] sm:$0xff]
        %v458 = vld [vmem:[%s385 + $0x68] sm:$0xff]
        %v459 = vld [vmem:[%s385 + $0x70] sm:$0xff]
        %v460 = vld [vmem:[%s385 + $0x78] sm:$0xff]
        %v461 = vld [vmem:[%s385 + $0x80] sm:$0xff]
        %v462 = vld [vmem:[%s385 + $0x88] sm:$0xff]
        %v463 = vld [vmem:[%s385 + $0x90] sm:$0xff]
        %v464 = vld [vmem:[%s385 + $0x98] sm:$0xff]
        %v465 = vld [vmem:[%s385 + $0xa0] sm:$0xff]
        %v466 = vld [vmem:[%s385 + $0xa8] sm:$0xff]
        %v467 = vld [vmem:[%s385 + $0xb0] sm:$0xff]
        %v468 = vld [vmem:[%s385 + $0xb8] sm:$0xff]
        %v469 = vld [vmem:[%s385 + $0xc0] sm:$0xff]
        %v470 = vld [vmem:[%s385 + $0xc8] sm:$0xff]
        %v471 = vld [vmem:[%s385 + $0xd0] sm:$0xff]
        %v472 = vld [vmem:[%s385 + $0xd8] sm:$0xff]
        %v473 = vld [vmem:[%s385 + $0xe0] sm:$0xff]
        %v474 = vld [vmem:[%s385 + $0xe8] sm:$0xff]
        %v475 = vld [vmem:[%s385 + $0xf0] sm:$0xff]
        %v476 = vld [vmem:[%s385 + $0xf8] sm:$0xff]
        %v477 = vpack.c.bf16 %v447, %v445
        %v478 = vpack.c.bf16 %v448, %v446
        %v479 = vpack.c.bf16 %v451, %v449
        %v480 = vpack.c.bf16 %v452, %v450
        %v481 = vpack.c.bf16 %v455, %v453
        %v482 = vpack.c.bf16 %v456, %v454
        %v483 = vpack.c.bf16 %v459, %v457
        %v484 = vpack.c.bf16 %v460, %v458
        %v485 = vpack.c.bf16 %v463, %v461
        %v486 = vpack.c.bf16 %v464, %v462
        %v487 = vpack.c.bf16 %v467, %v465
        %v488 = vpack.c.bf16 %v468, %v466
        %v489 = vpack.c.bf16 %v471, %v469
        %v490 = vpack.c.bf16 %v472, %v470
        %v491 = vpack.c.bf16 %v475, %v473
        %v492 = vpack.c.bf16 %v476, %v474
        %v493 = vld [vmem:[%s2] sm:$0xf]
        %v494 = vld [vmem:[%s2 + $0x4] sm:$0xf]
        %v495 = vld [vmem:[%s2 + $0x8] sm:$0xf]
        %v496 = vld [vmem:[%s2 + $0xc] sm:$0xf]
        %v497 = vld [vmem:[%s2 + $0x10] sm:$0xf]
        %v498 = vld [vmem:[%s2 + $0x14] sm:$0xf]
        %v499 = vld [vmem:[%s2 + $0x18] sm:$0xf]
        %v500 = vld [vmem:[%s2 + $0x1c] sm:$0xf]
        %v501 = vld [vmem:[%s2 + $0x20] sm:$0xf]
        %v502 = vld [vmem:[%s2 + $0x24] sm:$0xf]
        %v503 = vld [vmem:[%s2 + $0x28] sm:$0xf]
        %v504 = vld [vmem:[%s2 + $0x2c] sm:$0xf]
        %v505 = vld [vmem:[%s2 + $0x30] sm:$0xf]
        %v506 = vld [vmem:[%s2 + $0x34] sm:$0xf]
        %v507 = vld [vmem:[%s2 + $0x38] sm:$0xf]
        %v508 = vld [vmem:[%s2 + $0x3c] sm:$0xf]
        %v509 = vld [vmem:[%s2 + $0x40] sm:$0xf]
        %v510 = vld [vmem:[%s2 + $0x44] sm:$0xf]
        %v511 = vld [vmem:[%s2 + $0x48] sm:$0xf]
        %v512 = vld [vmem:[%s2 + $0x4c] sm:$0xf]
        %v513 = vld [vmem:[%s2 + $0x50] sm:$0xf]
        %v514 = vld [vmem:[%s2 + $0x54] sm:$0xf]
        %v515 = vld [vmem:[%s2 + $0x58] sm:$0xf]
        %v516 = vld [vmem:[%s2 + $0x5c] sm:$0xf]
        %v517 = vld [vmem:[%s2 + $0x60] sm:$0xf]
        %v518 = vld [vmem:[%s2 + $0x64] sm:$0xf]
        %v519 = vld [vmem:[%s2 + $0x68] sm:$0xf]
        %v520 = vld [vmem:[%s2 + $0x6c] sm:$0xf]
        %v521 = vld [vmem:[%s2 + $0x70] sm:$0xf]
        %v522 = vld [vmem:[%s2 + $0x74] sm:$0xf]
        %v523 = vld [vmem:[%s2 + $0x78] sm:$0xf]
        %v524 = vld [vmem:[%s2 + $0x7c] sm:$0xf]
        %v525 = vld [vmem:[%s3] sm:$0x1]
        %v527 = vperm.slane %v525, 0
        %v561 = vunpack.c.l.b16 %v493
        %v562 = vunpack.c.l.b16 %v494
        %v563 = vunpack.c.l.b16 %v495
        %v564 = vunpack.c.l.b16 %v496
        %v565 = vunpack.c.l.b16 %v497
        %v566 = vunpack.c.l.b16 %v498
        %v567 = vunpack.c.l.b16 %v499
        %v568 = vunpack.c.l.b16 %v500
        %v569 = vunpack.c.l.b16 %v501
        %v570 = vunpack.c.l.b16 %v502
        %v571 = vunpack.c.l.b16 %v503
        %v572 = vunpack.c.l.b16 %v504
        %v573 = vunpack.c.l.b16 %v505
        %v574 = vunpack.c.l.b16 %v506
        %v575 = vunpack.c.l.b16 %v507
        %v576 = vunpack.c.l.b16 %v508
        %v577 = vunpack.c.l.b16 %v509
        %v578 = vunpack.c.l.b16 %v510
        %v579 = vunpack.c.l.b16 %v511
        %v580 = vunpack.c.l.b16 %v512
        %v581 = vunpack.c.l.b16 %v513
        %v582 = vunpack.c.l.b16 %v514
        %v583 = vunpack.c.l.b16 %v515
        %v584 = vunpack.c.l.b16 %v516
        %v585 = vunpack.c.l.b16 %v517
        %v586 = vunpack.c.l.b16 %v518
        %v587 = vunpack.c.l.b16 %v519
        %v588 = vunpack.c.l.b16 %v520
        %v589 = vunpack.c.l.b16 %v521
        %v590 = vunpack.c.l.b16 %v522
        %v591 = vunpack.c.l.b16 %v523
        %v592 = vunpack.c.l.b16 %v524
        %v593 = vpack.c.b16 %v562, %v561
        %v594 = vpack.c.b16 %v564, %v563
        %v595 = vpack.c.b16 %v566, %v565
        %v596 = vpack.c.b16 %v568, %v567
        %v597 = vpack.c.b16 %v570, %v569
        %v598 = vpack.c.b16 %v572, %v571
        %v599 = vpack.c.b16 %v574, %v573
        %v600 = vpack.c.b16 %v576, %v575
        %v601 = vpack.c.b16 %v578, %v577
        %v602 = vpack.c.b16 %v580, %v579
        %v603 = vpack.c.b16 %v582, %v581
        %v604 = vpack.c.b16 %v584, %v583
        %v605 = vpack.c.b16 %v586, %v585
        %v606 = vpack.c.b16 %v588, %v587
        %v607 = vpack.c.b16 %v590, %v589
        %v608 = vpack.c.b16 %v592, %v591
        %625 = vmatpush.bf16.msra.mxu0 %v600
        %626 = vmatpush.bf16.msra.mxu0 %v599
        %627 = vmatpush.bf16.msra.mxu0 %v598
        %628 = vmatpush.bf16.msra.mxu0 %v597
        %629 = vmatpush.bf16.msra.mxu0 %v596
        %630 = vmatpush.bf16.msra.mxu0 %v595
        %631 = vmatpush.bf16.msra.mxu0 %v594
        %632 = vmatpush.bf16.msra.mxu0 %v593
        %633 = vmatmul.bf16.gmra.mxu0 %v477
        %v634 = vpop.f32.mrf.mxu0
        %v635 = vadd.f32 %v527, %v634
        %v636 = vpop.f32.mrf.mxu0
        %v637 = vadd.f32 %v527, %v636
        %638 = vmatmul.bf16.gmra.mxu0 %v479
        %v639 = vpop.f32.mrf.mxu0
        %v640 = vadd.f32 %v527, %v639
        %v641 = vpop.f32.mrf.mxu0
        %v642 = vadd.f32 %v527, %v641
        %643 = vmatmul.bf16.gmra.mxu0 %v481
        %v644 = vpop.f32.mrf.mxu0
        %v645 = vadd.f32 %v527, %v644
        %v646 = vpop.f32.mrf.mxu0
        %v647 = vadd.f32 %v527, %v646
        %648 = vmatmul.bf16.gmra.mxu0 %v483
        %v649 = vpop.f32.mrf.mxu0
        %v650 = vadd.f32 %v527, %v649
        %v651 = vpop.f32.mrf.mxu0
        %v652 = vadd.f32 %v527, %v651
        %653 = vmatmul.bf16.gmra.mxu0 %v485
        %v654 = vpop.f32.mrf.mxu0
        %v655 = vadd.f32 %v527, %v654
        %v656 = vpop.f32.mrf.mxu0
        %v657 = vadd.f32 %v527, %v656
        %658 = vmatmul.bf16.gmra.mxu0 %v487
        %v659 = vpop.f32.mrf.mxu0
        %v660 = vadd.f32 %v527, %v659
        %v661 = vpop.f32.mrf.mxu0
        %v662 = vadd.f32 %v527, %v661
        %663 = vmatmul.bf16.gmra.mxu0 %v489
        %v664 = vpop.f32.mrf.mxu0
        %v665 = vadd.f32 %v527, %v664
        %v666 = vpop.f32.mrf.mxu0
        %v667 = vadd.f32 %v527, %v666
        %668 = vmatmul.bf16.gmra.mxu0 %v491
        %v669 = vpop.f32.mrf.mxu0
        %v670 = vadd.f32 %v527, %v669
        %v671 = vpop.f32.mrf.mxu0
        %v672 = vadd.f32 %v527, %v671
        %673 = vdwg.mxu0
        %674 = vmatpush.bf16.msra.mxu0 %v608
        %675 = vmatpush.bf16.msra.mxu0 %v607
        %676 = vmatpush.bf16.msra.mxu0 %v606
        %677 = vmatpush.bf16.msra.mxu0 %v605
        %678 = vmatpush.bf16.msra.mxu0 %v604
        %679 = vmatpush.bf16.msra.mxu0 %v603
        %680 = vmatpush.bf16.msra.mxu0 %v602
        %681 = vmatpush.bf16.msra.mxu0 %v601
        %682 = vmatmul.bf16.gmra.mxu0 %v478
        %v683 = vpop.f32.mrf.mxu0
        %v684 = vadd.f32 %v635, %v683
        %v685 = vpop.f32.mrf.mxu0
        %v686 = vadd.f32 %v637, %v685
        %687 = vmatmul.bf16.gmra.mxu0 %v480
        %v688 = vpop.f32.mrf.mxu0
        %v689 = vadd.f32 %v640, %v688
        %v690 = vpop.f32.mrf.mxu0
        %v691 = vadd.f32 %v642, %v690
        %692 = vmatmul.bf16.gmra.mxu0 %v482
        %v693 = vpop.f32.mrf.mxu0
        %v694 = vadd.f32 %v645, %v693
        %v695 = vpop.f32.mrf.mxu0
        %v696 = vadd.f32 %v647, %v695
        %697 = vmatmul.bf16.gmra.mxu0 %v484
        %v698 = vpop.f32.mrf.mxu0
        %v699 = vadd.f32 %v650, %v698
        %v700 = vpop.f32.mrf.mxu0
        %v701 = vadd.f32 %v652, %v700
        %702 = vmatmul.bf16.gmra.mxu0 %v486
        %v703 = vpop.f32.mrf.mxu0
        %v704 = vadd.f32 %v655, %v703
        %v705 = vpop.f32.mrf.mxu0
        %v706 = vadd.f32 %v657, %v705
        %707 = vmatmul.bf16.gmra.mxu0 %v488
        %v708 = vpop.f32.mrf.mxu0
        %v709 = vadd.f32 %v660, %v708
        %v710 = vpop.f32.mrf.mxu0
        %v711 = vadd.f32 %v662, %v710
        %712 = vmatmul.bf16.gmra.mxu0 %v490
        %v713 = vpop.f32.mrf.mxu0
        %v714 = vadd.f32 %v665, %v713
        %v715 = vpop.f32.mrf.mxu0
        %v716 = vadd.f32 %v667, %v715
        %717 = vmatmul.bf16.gmra.mxu0 %v492
        %v718 = vpop.f32.mrf.mxu0
        %v719 = vadd.f32 %v670, %v718
        %v720 = vpop.f32.mrf.mxu0
        %v721 = vadd.f32 %v672, %v720
        %722 = vdwg.mxu0
        %v723 = vmax.f32 %v684, 0.0
        %v724 = vmax.f32 %v686, 0.0
        %v725 = vmax.f32 %v689, 0.0
        %v726 = vmax.f32 %v691, 0.0
        %v727 = vmax.f32 %v694, 0.0
        %v728 = vmax.f32 %v696, 0.0
        %v729 = vmax.f32 %v699, 0.0
        %v730 = vmax.f32 %v701, 0.0
        %v731 = vmax.f32 %v704, 0.0
        %v732 = vmax.f32 %v706, 0.0
        %v733 = vmax.f32 %v709, 0.0
        %v734 = vmax.f32 %v711, 0.0
        %v735 = vmax.f32 %v714, 0.0
        %v736 = vmax.f32 %v716, 0.0
        %v737 = vmax.f32 %v719, 0.0
        %v738 = vmax.f32 %v721, 0.0
        %v739 = vpack.c.bf16 %v724, %v723
        %v740 = vpack.c.bf16 %v726, %v725
        %v741 = vpack.c.bf16 %v728, %v727
        %v742 = vpack.c.bf16 %v730, %v729
        %v743 = vpack.c.bf16 %v732, %v731
        %v744 = vpack.c.bf16 %v734, %v733
        %v745 = vpack.c.bf16 %v736, %v735
        %v746 = vpack.c.bf16 %v738, %v737
        %v747 = vld [vmem:[%s4] sm:$0xf]
        %v748 = vld [vmem:[%s4 + $0x4] sm:$0xf]
        %v749 = vld [vmem:[%s4 + $0x8] sm:$0xf]
        %v750 = vld [vmem:[%s4 + $0xc] sm:$0xf]
        %v751 = vld [vmem:[%s4 + $0x10] sm:$0xf]
        %v752 = vld [vmem:[%s4 + $0x14] sm:$0xf]
        %v753 = vld [vmem:[%s4 + $0x18] sm:$0xf]
        %v754 = vld [vmem:[%s4 + $0x1c] sm:$0xf]
        %v755 = vld [vmem:[%s4 + $0x20] sm:$0xf]
        %v756 = vld [vmem:[%s4 + $0x24] sm:$0xf]
        %v757 = vld [vmem:[%s4 + $0x28] sm:$0xf]
        %v758 = vld [vmem:[%s4 + $0x2c] sm:$0xf]
        %v759 = vld [vmem:[%s4 + $0x30] sm:$0xf]
        %v760 = vld [vmem:[%s4 + $0x34] sm:$0xf]
        %v761 = vld [vmem:[%s4 + $0x38] sm:$0xf]
        %v762 = vld [vmem:[%s4 + $0x3c] sm:$0xf]
        %v763 = vld [vmem:[%s5] sm:$0x1]
        %v765 = vperm.slane %v763, 0
        %v783 = vunpack.c.l.b16 %v747
        %v784 = vunpack.c.l.b16 %v748
        %v785 = vunpack.c.l.b16 %v749
        %v786 = vunpack.c.l.b16 %v750
        %v787 = vunpack.c.l.b16 %v751
        %v788 = vunpack.c.l.b16 %v752
        %v789 = vunpack.c.l.b16 %v753
        %v790 = vunpack.c.l.b16 %v754
        %v791 = vunpack.c.l.b16 %v755
        %v792 = vunpack.c.l.b16 %v756
        %v793 = vunpack.c.l.b16 %v757
        %v794 = vunpack.c.l.b16 %v758
        %v795 = vunpack.c.l.b16 %v759
        %v796 = vunpack.c.l.b16 %v760
        %v797 = vunpack.c.l.b16 %v761
        %v798 = vunpack.c.l.b16 %v762
        %v799 = vpack.c.b16 %v784, %v783
        %v800 = vpack.c.b16 %v786, %v785
        %v801 = vpack.c.b16 %v788, %v787
        %v802 = vpack.c.b16 %v790, %v789
        %v803 = vpack.c.b16 %v792, %v791
        %v804 = vpack.c.b16 %v794, %v793
        %v805 = vpack.c.b16 %v796, %v795
        %v806 = vpack.c.b16 %v798, %v797
        %815 = vmatpush.bf16.msra.mxu0 %v806
        %816 = vmatpush.bf16.msra.mxu0 %v805
        %817 = vmatpush.bf16.msra.mxu0 %v804
        %818 = vmatpush.bf16.msra.mxu0 %v803
        %819 = vmatpush.bf16.msra.mxu0 %v802
        %820 = vmatpush.bf16.msra.mxu0 %v801
        %821 = vmatpush.bf16.msra.mxu0 %v800
        %822 = vmatpush.bf16.msra.mxu0 %v799
        %823 = vmatmul.bf16.gmra.mxu0 %v739
        %v824 = vpop.f32.mrf.mxu0
        %v825 = vadd.f32 %v765, %v824
        %v826 = vpop.f32.mrf.mxu0
        %v827 = vadd.f32 %v765, %v826
        %828 = vmatmul.bf16.gmra.mxu0 %v740
        %v829 = vpop.f32.mrf.mxu0
        %v830 = vadd.f32 %v765, %v829
        %v831 = vpop.f32.mrf.mxu0
        %v832 = vadd.f32 %v765, %v831
        %833 = vmatmul.bf16.gmra.mxu0 %v741
        %v834 = vpop.f32.mrf.mxu0
        %v835 = vadd.f32 %v765, %v834
        %v836 = vpop.f32.mrf.mxu0
        %v837 = vadd.f32 %v765, %v836
        %838 = vmatmul.bf16.gmra.mxu0 %v742
        %v839 = vpop.f32.mrf.mxu0
        %v840 = vadd.f32 %v765, %v839
        %v841 = vpop.f32.mrf.mxu0
        %v842 = vadd.f32 %v765, %v841
        %843 = vmatmul.bf16.gmra.mxu0 %v743
        %v844 = vpop.f32.mrf.mxu0
        %v845 = vadd.f32 %v765, %v844
        %v846 = vpop.f32.mrf.mxu0
        %v847 = vadd.f32 %v765, %v846
        %848 = vmatmul.bf16.gmra.mxu0 %v744
        %v849 = vpop.f32.mrf.mxu0
        %v850 = vadd.f32 %v765, %v849
        %v851 = vpop.f32.mrf.mxu0
        %v852 = vadd.f32 %v765, %v851
        %853 = vmatmul.bf16.gmra.mxu0 %v745
        %v854 = vpop.f32.mrf.mxu0
        %v855 = vadd.f32 %v765, %v854
        %v856 = vpop.f32.mrf.mxu0
        %v857 = vadd.f32 %v765, %v856
        %858 = vmatmul.bf16.gmra.mxu0 %v746
        %v859 = vpop.f32.mrf.mxu0
        %v860 = vadd.f32 %v765, %v859
        %v861 = vpop.f32.mrf.mxu0
        %v862 = vadd.f32 %v765, %v861
        %863 = vdwg.mxu0
        %864 = vst [vmem:[%s434] sm:$0xff] %v825
        %865 = vst [vmem:[%s434 + $0x8] sm:$0xff] %v827
        %866 = vst [vmem:[%s434 + $0x10] sm:$0xff] %v830
        %867 = vst [vmem:[%s434 + $0x18] sm:$0xff] %v832
        %868 = vst [vmem:[%s434 + $0x20] sm:$0xff] %v835
        %869 = vst [vmem:[%s434 + $0x28] sm:$0xff] %v837
        %870 = vst [vmem:[%s434 + $0x30] sm:$0xff] %v840
        %871 = vst [vmem:[%s434 + $0x38] sm:$0xff] %v842
        %872 = vst [vmem:[%s434 + $0x40] sm:$0xff] %v845
        %873 = vst [vmem:[%s434 + $0x48] sm:$0xff] %v847
        %874 = vst [vmem:[%s434 + $0x50] sm:$0xff] %v850
        %875 = vst [vmem:[%s434 + $0x58] sm:$0xff] %v852
        %876 = vst [vmem:[%s434 + $0x60] sm:$0xff] %v855
        %877 = vst [vmem:[%s434 + $0x68] sm:$0xff] %v857
        %878 = vst [vmem:[%s434 + $0x70] sm:$0xff] %v860
        %879 = vst [vmem:[%s434 + $0x78] sm:$0xff] %v862
        %v880 = vld [vmem:[%s440] sm:$0xff]
        %v881 = vld [vmem:[%s440 + $0x8] sm:$0xff]
        %v882 = vld [vmem:[%s440 + $0x10] sm:$0xff]
        %v883 = vld [vmem:[%s440 + $0x18] sm:$0xff]
        %v884 = vld [vmem:[%s440 + $0x20] sm:$0xff]
        %v885 = vld [vmem:[%s440 + $0x28] sm:$0xff]
        %v886 = vld [vmem:[%s440 + $0x30] sm:$0xff]
        %v887 = vld [vmem:[%s440 + $0x38] sm:$0xff]
        %v888 = vld [vmem:[%s440 + $0x40] sm:$0xff]
        %v889 = vld [vmem:[%s440 + $0x48] sm:$0xff]
        %v890 = vld [vmem:[%s440 + $0x50] sm:$0xff]
        %v891 = vld [vmem:[%s440 + $0x58] sm:$0xff]
        %v892 = vld [vmem:[%s440 + $0x60] sm:$0xff]
        %v893 = vld [vmem:[%s440 + $0x68] sm:$0xff]
        %v894 = vld [vmem:[%s440 + $0x70] sm:$0xff]
        %v895 = vld [vmem:[%s440 + $0x78] sm:$0xff]
        %912 = vrot.lane.b32.xlu0 %v880, 64
        %v913 = vpop.permute.xlu0 %912
        %914 = vrot.lane.b32.xlu0 %v881, 64
        %v915 = vpop.permute.xlu0 %914
        %916 = vrot.lane.b32.xlu0 %v882, 64
        %v917 = vpop.permute.xlu0 %916
        %918 = vrot.lane.b32.xlu0 %v883, 64
        %v919 = vpop.permute.xlu0 %918
        %920 = vrot.lane.b32.xlu0 %v884, 64
        %v921 = vpop.permute.xlu0 %920
        %922 = vrot.lane.b32.xlu0 %v885, 64
        %v923 = vpop.permute.xlu0 %922
        %924 = vrot.lane.b32.xlu0 %v886, 64
        %v925 = vpop.permute.xlu0 %924
        %926 = vrot.lane.b32.xlu0 %v887, 64
        %v927 = vpop.permute.xlu0 %926
        %928 = vrot.lane.b32.xlu0 %v888, 64
        %v929 = vpop.permute.xlu0 %928
        %930 = vrot.lane.b32.xlu0 %v889, 64
        %v931 = vpop.permute.xlu0 %930
        %932 = vrot.lane.b32.xlu0 %v890, 64
        %v933 = vpop.permute.xlu0 %932
        %934 = vrot.lane.b32.xlu0 %v891, 64
        %v935 = vpop.permute.xlu0 %934
        %936 = vrot.lane.b32.xlu0 %v892, 64
        %v937 = vpop.permute.xlu0 %936
        %938 = vrot.lane.b32.xlu0 %v893, 64
        %v939 = vpop.permute.xlu0 %938
        %940 = vrot.lane.b32.xlu0 %v894, 64
        %v941 = vpop.permute.xlu0 %940
        %942 = vrot.lane.b32.xlu0 %v895, 64
        %v943 = vpop.permute.xlu0 %942
        %v960 = vmul.f32 %v825, %v913
        %v961 = vmul.f32 %v827, %v915
        %v962 = vmul.f32 %v830, %v917
        %v963 = vmul.f32 %v832, %v919
        %v964 = vmul.f32 %v835, %v921
        %v965 = vmul.f32 %v837, %v923
        %v966 = vmul.f32 %v840, %v925
        %v967 = vmul.f32 %v842, %v927
        %v968 = vmul.f32 %v845, %v929
        %v969 = vmul.f32 %v847, %v931
        %v970 = vmul.f32 %v850, %v933
        %v971 = vmul.f32 %v852, %v935
        %v972 = vmul.f32 %v855, %v937
        %v973 = vmul.f32 %v857, %v939
        %v974 = vmul.f32 %v860, %v941
        %v975 = vmul.f32 %v862, %v943
        %992 = vrot.lane.b32.xlu0 %v960, 64
        %v993 = vpop.permute.xlu0 %992
        %994 = vrot.lane.b32.xlu0 %v961, 64
        %v995 = vpop.permute.xlu0 %994
        %996 = vrot.lane.b32.xlu0 %v962, 64
        %v997 = vpop.permute.xlu0 %996
        %998 = vrot.lane.b32.xlu0 %v963, 64
        %v999 = vpop.permute.xlu0 %998
        %1000 = vrot.lane.b32.xlu0 %v964, 64
        %v1001 = vpop.permute.xlu0 %1000
        %1002 = vrot.lane.b32.xlu0 %v965, 64
        %v1003 = vpop.permute.xlu0 %1002
        %1004 = vrot.lane.b32.xlu0 %v966, 64
        %v1005 = vpop.permute.xlu0 %1004
        %1006 = vrot.lane.b32.xlu0 %v967, 64
        %v1007 = vpop.permute.xlu0 %1006
        %1008 = vrot.lane.b32.xlu0 %v968, 64
        %v1009 = vpop.permute.xlu0 %1008
        %1010 = vrot.lane.b32.xlu0 %v969, 64
        %v1011 = vpop.permute.xlu0 %1010
        %1012 = vrot.lane.b32.xlu0 %v970, 64
        %v1013 = vpop.permute.xlu0 %1012
        %1014 = vrot.lane.b32.xlu0 %v971, 64
        %v1015 = vpop.permute.xlu0 %1014
        %1016 = vrot.lane.b32.xlu0 %v972, 64
        %v1017 = vpop.permute.xlu0 %1016
        %1018 = vrot.lane.b32.xlu0 %v973, 64
        %v1019 = vpop.permute.xlu0 %1018
        %1020 = vrot.lane.b32.xlu0 %v974, 64
        %v1021 = vpop.permute.xlu0 %1020
        %1022 = vrot.lane.b32.xlu0 %v975, 64
        %v1023 = vpop.permute.xlu0 %1022
        %v1040 = vadd.f32 %v825, %v993
        %v1041 = vadd.f32 %v827, %v995
        %v1042 = vadd.f32 %v830, %v997
        %v1043 = vadd.f32 %v832, %v999
        %v1044 = vadd.f32 %v835, %v1001
        %v1045 = vadd.f32 %v837, %v1003
        %v1046 = vadd.f32 %v840, %v1005
        %v1047 = vadd.f32 %v842, %v1007
        %v1048 = vadd.f32 %v845, %v1009
        %v1049 = vadd.f32 %v847, %v1011
        %v1050 = vadd.f32 %v850, %v1013
        %v1051 = vadd.f32 %v852, %v1015
        %v1052 = vadd.f32 %v855, %v1017
        %v1053 = vadd.f32 %v857, %v1019
        %v1054 = vadd.f32 %v860, %v1021
        %v1055 = vadd.f32 %v862, %v1023
        %v1056 = vpack.c.bf16 %v1041, %v1040
        %v1057 = vpack.c.bf16 %v1043, %v1042
        %v1058 = vpack.c.bf16 %v1045, %v1044
        %v1059 = vpack.c.bf16 %v1047, %v1046
        %v1060 = vpack.c.bf16 %v1049, %v1048
        %v1061 = vpack.c.bf16 %v1051, %v1050
        %v1062 = vpack.c.bf16 %v1053, %v1052
        %v1063 = vpack.c.bf16 %v1055, %v1054
        %v1064 = vld [vmem:[%s6] sm:$0xf]
        %v1065 = vld [vmem:[%s6 + $0x4] sm:$0xf]
        %v1066 = vld [vmem:[%s6 + $0x8] sm:$0xf]
        %v1067 = vld [vmem:[%s6 + $0xc] sm:$0xf]
        %v1068 = vld [vmem:[%s6 + $0x10] sm:$0xf]
        %v1069 = vld [vmem:[%s6 + $0x14] sm:$0xf]
        %v1070 = vld [vmem:[%s6 + $0x18] sm:$0xf]
        %v1071 = vld [vmem:[%s6 + $0x1c] sm:$0xf]
        %v1072 = vld [vmem:[%s7] sm:$0x1]
        %v1074 = vperm.slane %v1072, 0
        %v1084 = vunpack.c.l.b16 %v1064
        %v1085 = vunpack.c.l.b16 %v1065
        %v1086 = vunpack.c.l.b16 %v1066
        %v1087 = vunpack.c.l.b16 %v1067
        %v1088 = vunpack.c.l.b16 %v1068
        %v1089 = vunpack.c.l.b16 %v1069
        %v1090 = vunpack.c.l.b16 %v1070
        %v1091 = vunpack.c.l.b16 %v1071
        %v1092 = vpack.c.b16 %v1085, %v1084
        %v1093 = vpack.c.b16 %v1087, %v1086
        %v1094 = vpack.c.b16 %v1089, %v1088
        %v1095 = vpack.c.b16 %v1091, %v1090
        %vm1100 = vcmask 523264
        %v1102 = vsel %vm1100, %v1056, 0
        %v1105 = vsel %vm1100, %v1057, 0
        %v1108 = vsel %vm1100, %v1058, 0
        %v1111 = vsel %vm1100, %v1059, 0
        %v1114 = vsel %vm1100, %v1060, 0
        %v1117 = vsel %vm1100, %v1061, 0
        %v1120 = vsel %vm1100, %v1062, 0
        %v1123 = vsel %vm1100, %v1063, 0
        %1125 = vmatpush.bf16.msra.mxu0 0
        %1126 = vmatpush.bf16.msra.mxu0 0
        %1127 = vmatpush.bf16.msra.mxu0 0
        %1128 = vmatpush.bf16.msra.mxu0 0
        %1129 = vmatpush.bf16.msra.mxu0 %v1095
        %1130 = vmatpush.bf16.msra.mxu0 %v1094
        %1131 = vmatpush.bf16.msra.mxu0 %v1093
        %1132 = vmatpush.bf16.msra.mxu0 %v1092
        %1133 = vmatmul.bf16.gmra.mxu0 %v1102
        %v1134 = vpop.f32.mrf.mxu0
        %v1135 = vadd.f32 %v1074, %v1134
        %v1136 = vpop.f32.mrf.mxu0
        %v1137 = vadd.f32 %v1074, %v1136
        %1138 = vmatmul.bf16.gmra.mxu0 %v1105
        %v1139 = vpop.f32.mrf.mxu0
        %v1140 = vadd.f32 %v1074, %v1139
        %v1141 = vpop.f32.mrf.mxu0
        %v1142 = vadd.f32 %v1074, %v1141
        %1143 = vmatmul.bf16.gmra.mxu0 %v1108
        %v1144 = vpop.f32.mrf.mxu0
        %v1145 = vadd.f32 %v1074, %v1144
        %v1146 = vpop.f32.mrf.mxu0
        %v1147 = vadd.f32 %v1074, %v1146
        %1148 = vmatmul.bf16.gmra.mxu0 %v1111
        %v1149 = vpop.f32.mrf.mxu0
        %v1150 = vadd.f32 %v1074, %v1149
        %v1151 = vpop.f32.mrf.mxu0
        %v1152 = vadd.f32 %v1074, %v1151
        %1153 = vmatmul.bf16.gmra.mxu0 %v1114
        %v1154 = vpop.f32.mrf.mxu0
        %v1155 = vadd.f32 %v1074, %v1154
        %v1156 = vpop.f32.mrf.mxu0
        %v1157 = vadd.f32 %v1074, %v1156
        %1158 = vmatmul.bf16.gmra.mxu0 %v1117
        %v1159 = vpop.f32.mrf.mxu0
        %v1160 = vadd.f32 %v1074, %v1159
        %v1161 = vpop.f32.mrf.mxu0
        %v1162 = vadd.f32 %v1074, %v1161
        %1163 = vmatmul.bf16.gmra.mxu0 %v1120
        %v1164 = vpop.f32.mrf.mxu0
        %v1165 = vadd.f32 %v1074, %v1164
        %v1166 = vpop.f32.mrf.mxu0
        %v1167 = vadd.f32 %v1074, %v1166
        %1168 = vmatmul.bf16.gmra.mxu0 %v1123
        %v1169 = vpop.f32.mrf.mxu0
        %v1170 = vadd.f32 %v1074, %v1169
        %v1171 = vpop.f32.mrf.mxu0
        %v1172 = vadd.f32 %v1074, %v1171
        %1173 = vdwg.mxu0
        %v1174 = vmax.f32 %v1135, 0.0
        %v1175 = vmax.f32 %v1137, 0.0
        %v1176 = vmax.f32 %v1140, 0.0
        %v1177 = vmax.f32 %v1142, 0.0
        %v1178 = vmax.f32 %v1145, 0.0
        %v1179 = vmax.f32 %v1147, 0.0
        %v1180 = vmax.f32 %v1150, 0.0
        %v1181 = vmax.f32 %v1152, 0.0
        %v1182 = vmax.f32 %v1155, 0.0
        %v1183 = vmax.f32 %v1157, 0.0
        %v1184 = vmax.f32 %v1160, 0.0
        %v1185 = vmax.f32 %v1162, 0.0
        %v1186 = vmax.f32 %v1165, 0.0
        %v1187 = vmax.f32 %v1167, 0.0
        %v1188 = vmax.f32 %v1170, 0.0
        %v1189 = vmax.f32 %v1172, 0.0
        %v1190 = vpack.c.bf16 %v1175, %v1174
        %v1191 = vpack.c.bf16 %v1177, %v1176
        %v1192 = vpack.c.bf16 %v1179, %v1178
        %v1193 = vpack.c.bf16 %v1181, %v1180
        %v1194 = vpack.c.bf16 %v1183, %v1182
        %v1195 = vpack.c.bf16 %v1185, %v1184
        %v1196 = vpack.c.bf16 %v1187, %v1186
        %v1197 = vpack.c.bf16 %v1189, %v1188
        %v1198 = vld [vmem:[%s8] sm:$0xff]
        %v1199 = vld [vmem:[%s8 + $0x8] sm:$0xff]
        %v1200 = vld [vmem:[%s8 + $0x10] sm:$0xff]
        %v1201 = vld [vmem:[%s8 + $0x18] sm:$0xff]
        %v1202 = vld [vmem:[%s8 + $0x20] sm:$0xff]
        %v1203 = vld [vmem:[%s8 + $0x28] sm:$0xff]
        %v1204 = vld [vmem:[%s8 + $0x30] sm:$0xff]
        %v1205 = vld [vmem:[%s8 + $0x38] sm:$0xff]
        %v1206 = vld [vmem:[%s8 + $0x40] sm:$0xff]
        %v1207 = vld [vmem:[%s8 + $0x48] sm:$0xff]
        %v1208 = vld [vmem:[%s8 + $0x50] sm:$0xff]
        %v1209 = vld [vmem:[%s8 + $0x58] sm:$0xff]
        %v1210 = vld [vmem:[%s8 + $0x60] sm:$0xff]
        %v1211 = vld [vmem:[%s8 + $0x68] sm:$0xff]
        %v1212 = vld [vmem:[%s8 + $0x70] sm:$0xff]
        %v1213 = vld [vmem:[%s8 + $0x78] sm:$0xff]
        %v1214 = vld [vmem:[%s9] sm:$0x3]
        %v1216 = vperm.slane %v1214, 0
        %v1217 = vperm.slane %v1214, 1
        %v1236 = vunpack.c.l.b16 %v1198
        %v1237 = vunpack.c.h.b16 %v1198
        %v1238 = vunpack.c.l.b16 %v1199
        %v1239 = vunpack.c.h.b16 %v1199
        %v1240 = vunpack.c.l.b16 %v1200
        %v1241 = vunpack.c.h.b16 %v1200
        %v1242 = vunpack.c.l.b16 %v1201
        %v1243 = vunpack.c.h.b16 %v1201
        %v1244 = vunpack.c.l.b16 %v1202
        %v1245 = vunpack.c.h.b16 %v1202
        %v1246 = vunpack.c.l.b16 %v1203
        %v1247 = vunpack.c.h.b16 %v1203
        %v1248 = vunpack.c.l.b16 %v1204
        %v1249 = vunpack.c.h.b16 %v1204
        %v1250 = vunpack.c.l.b16 %v1205
        %v1251 = vunpack.c.h.b16 %v1205
        %v1252 = vunpack.c.l.b16 %v1206
        %v1253 = vunpack.c.h.b16 %v1206
        %v1254 = vunpack.c.l.b16 %v1207
        %v1255 = vunpack.c.h.b16 %v1207
        %v1256 = vunpack.c.l.b16 %v1208
        %v1257 = vunpack.c.h.b16 %v1208
        %v1258 = vunpack.c.l.b16 %v1209
        %v1259 = vunpack.c.h.b16 %v1209
        %v1260 = vunpack.c.l.b16 %v1210
        %v1261 = vunpack.c.h.b16 %v1210
        %v1262 = vunpack.c.l.b16 %v1211
        %v1263 = vunpack.c.h.b16 %v1211
        %v1264 = vunpack.c.l.b16 %v1212
        %v1265 = vunpack.c.h.b16 %v1212
        %v1266 = vunpack.c.l.b16 %v1213
        %v1267 = vunpack.c.h.b16 %v1213
        %v1268 = vpack.c.b16 %v1238, %v1236
        %v1269 = vpack.c.b16 %v1239, %v1237
        %v1270 = vpack.c.b16 %v1242, %v1240
        %v1271 = vpack.c.b16 %v1243, %v1241
        %v1272 = vpack.c.b16 %v1246, %v1244
        %v1273 = vpack.c.b16 %v1247, %v1245
        %v1274 = vpack.c.b16 %v1250, %v1248
        %v1275 = vpack.c.b16 %v1251, %v1249
        %v1276 = vpack.c.b16 %v1254, %v1252
        %v1277 = vpack.c.b16 %v1255, %v1253
        %v1278 = vpack.c.b16 %v1258, %v1256
        %v1279 = vpack.c.b16 %v1259, %v1257
        %v1280 = vpack.c.b16 %v1262, %v1260
        %v1281 = vpack.c.b16 %v1263, %v1261
        %v1282 = vpack.c.b16 %v1266, %v1264
        %v1283 = vpack.c.b16 %v1267, %v1265
        %1300 = vmatpush.bf16.msra.mxu0 %v1282
        %1301 = vmatpush.bf16.msra.mxu0 %v1280
        %1302 = vmatpush.bf16.msra.mxu0 %v1278
        %1303 = vmatpush.bf16.msra.mxu0 %v1276
        %1304 = vmatpush.bf16.msra.mxu0 %v1274
        %1305 = vmatpush.bf16.msra.mxu0 %v1272
        %1306 = vmatpush.bf16.msra.mxu0 %v1270
        %1307 = vmatpush.bf16.msra.mxu0 %v1268
        %1308 = vmatmul.bf16.gmra.mxu0 %v1190
        %v1309 = vpop.f32.mrf.mxu0
        %v1310 = vadd.f32 %v1216, %v1309
        %v1311 = vpop.f32.mrf.mxu0
        %v1312 = vadd.f32 %v1216, %v1311
        %1313 = vmatmul.bf16.gmra.mxu0 %v1191
        %v1314 = vpop.f32.mrf.mxu0
        %v1315 = vadd.f32 %v1216, %v1314
        %v1316 = vpop.f32.mrf.mxu0
        %v1317 = vadd.f32 %v1216, %v1316
        %1318 = vmatmul.bf16.gmra.mxu0 %v1192
        %v1319 = vpop.f32.mrf.mxu0
        %v1320 = vadd.f32 %v1216, %v1319
        %v1321 = vpop.f32.mrf.mxu0
        %v1322 = vadd.f32 %v1216, %v1321
        %1323 = vmatmul.bf16.gmra.mxu0 %v1193
        %v1324 = vpop.f32.mrf.mxu0
        %v1325 = vadd.f32 %v1216, %v1324
        %v1326 = vpop.f32.mrf.mxu0
        %v1327 = vadd.f32 %v1216, %v1326
        %1328 = vmatmul.bf16.gmra.mxu0 %v1194
        %v1329 = vpop.f32.mrf.mxu0
        %v1330 = vadd.f32 %v1216, %v1329
        %v1331 = vpop.f32.mrf.mxu0
        %v1332 = vadd.f32 %v1216, %v1331
        %1333 = vmatmul.bf16.gmra.mxu0 %v1195
        %v1334 = vpop.f32.mrf.mxu0
        %v1335 = vadd.f32 %v1216, %v1334
        %v1336 = vpop.f32.mrf.mxu0
        %v1337 = vadd.f32 %v1216, %v1336
        %1338 = vmatmul.bf16.gmra.mxu0 %v1196
        %v1339 = vpop.f32.mrf.mxu0
        %v1340 = vadd.f32 %v1216, %v1339
        %v1341 = vpop.f32.mrf.mxu0
        %v1342 = vadd.f32 %v1216, %v1341
        %1343 = vmatmul.bf16.gmra.mxu0 %v1197
        %v1344 = vpop.f32.mrf.mxu0
        %v1345 = vadd.f32 %v1216, %v1344
        %v1346 = vpop.f32.mrf.mxu0
        %v1347 = vadd.f32 %v1216, %v1346
        %1348 = vdwg.mxu0
        %1349 = vmatpush.bf16.msra.mxu0 %v1283
        %1350 = vmatpush.bf16.msra.mxu0 %v1281
        %1351 = vmatpush.bf16.msra.mxu0 %v1279
        %1352 = vmatpush.bf16.msra.mxu0 %v1277
        %1353 = vmatpush.bf16.msra.mxu0 %v1275
        %1354 = vmatpush.bf16.msra.mxu0 %v1273
        %1355 = vmatpush.bf16.msra.mxu0 %v1271
        %1356 = vmatpush.bf16.msra.mxu0 %v1269
        %1357 = vmatmul.bf16.gmra.mxu0 %v1190
        %v1358 = vpop.f32.mrf.mxu0
        %v1359 = vadd.f32 %v1217, %v1358
        %v1360 = vpop.f32.mrf.mxu0
        %v1361 = vadd.f32 %v1217, %v1360
        %1362 = vmatmul.bf16.gmra.mxu0 %v1191
        %v1363 = vpop.f32.mrf.mxu0
        %v1364 = vadd.f32 %v1217, %v1363
        %v1365 = vpop.f32.mrf.mxu0
        %v1366 = vadd.f32 %v1217, %v1365
        %1367 = vmatmul.bf16.gmra.mxu0 %v1192
        %v1368 = vpop.f32.mrf.mxu0
        %v1369 = vadd.f32 %v1217, %v1368
        %v1370 = vpop.f32.mrf.mxu0
        %v1371 = vadd.f32 %v1217, %v1370
        %1372 = vmatmul.bf16.gmra.mxu0 %v1193
        %v1373 = vpop.f32.mrf.mxu0
        %v1374 = vadd.f32 %v1217, %v1373
        %v1375 = vpop.f32.mrf.mxu0
        %v1376 = vadd.f32 %v1217, %v1375
        %1377 = vmatmul.bf16.gmra.mxu0 %v1194
        %v1378 = vpop.f32.mrf.mxu0
        %v1379 = vadd.f32 %v1217, %v1378
        %v1380 = vpop.f32.mrf.mxu0
        %v1381 = vadd.f32 %v1217, %v1380
        %1382 = vmatmul.bf16.gmra.mxu0 %v1195
        %v1383 = vpop.f32.mrf.mxu0
        %v1384 = vadd.f32 %v1217, %v1383
        %v1385 = vpop.f32.mrf.mxu0
        %v1386 = vadd.f32 %v1217, %v1385
        %1387 = vmatmul.bf16.gmra.mxu0 %v1196
        %v1388 = vpop.f32.mrf.mxu0
        %v1389 = vadd.f32 %v1217, %v1388
        %v1390 = vpop.f32.mrf.mxu0
        %v1391 = vadd.f32 %v1217, %v1390
        %1392 = vmatmul.bf16.gmra.mxu0 %v1197
        %v1393 = vpop.f32.mrf.mxu0
        %v1394 = vadd.f32 %v1217, %v1393
        %v1395 = vpop.f32.mrf.mxu0
        %v1396 = vadd.f32 %v1217, %v1395
        %1397 = vdwg.mxu0
        %v1398 = vsub.f32 0.0, %v1310
        %v1399 = vsub.f32 0.0, %v1359
        %v1400 = vsub.f32 0.0, %v1312
        %v1401 = vsub.f32 0.0, %v1361
        %v1402 = vsub.f32 0.0, %v1315
        %v1403 = vsub.f32 0.0, %v1364
        %v1404 = vsub.f32 0.0, %v1317
        %v1405 = vsub.f32 0.0, %v1366
        %v1406 = vsub.f32 0.0, %v1320
        %v1407 = vsub.f32 0.0, %v1369
        %v1408 = vsub.f32 0.0, %v1322
        %v1409 = vsub.f32 0.0, %v1371
        %v1410 = vsub.f32 0.0, %v1325
        %v1411 = vsub.f32 0.0, %v1374
        %v1412 = vsub.f32 0.0, %v1327
        %v1413 = vsub.f32 0.0, %v1376
        %v1414 = vsub.f32 0.0, %v1330
        %v1415 = vsub.f32 0.0, %v1379
        %v1416 = vsub.f32 0.0, %v1332
        %v1417 = vsub.f32 0.0, %v1381
        %v1418 = vsub.f32 0.0, %v1335
        %v1419 = vsub.f32 0.0, %v1384
        %v1420 = vsub.f32 0.0, %v1337
        %v1421 = vsub.f32 0.0, %v1386
        %v1422 = vsub.f32 0.0, %v1340
        %v1423 = vsub.f32 0.0, %v1389
        %v1424 = vsub.f32 0.0, %v1342
        %v1425 = vsub.f32 0.0, %v1391
        %v1426 = vsub.f32 0.0, %v1345
        %v1427 = vsub.f32 0.0, %v1394
        %v1428 = vsub.f32 0.0, %v1347
        %v1429 = vsub.f32 0.0, %v1396
        %v1430 = vmul.f32 %v1398, 1.442695
        %v1431 = vpow.pop %v1430
        %v1432 = vmul.f32 %v1399, 1.442695
        %v1433 = vpow.pop %v1432
        %v1434 = vmul.f32 %v1400, 1.442695
        %v1435 = vpow.pop %v1434
        %v1436 = vmul.f32 %v1401, 1.442695
        %v1437 = vpow.pop %v1436
        %v1438 = vmul.f32 %v1402, 1.442695
        %v1439 = vpow.pop %v1438
        %v1440 = vmul.f32 %v1403, 1.442695
        %v1441 = vpow.pop %v1440
        %v1442 = vmul.f32 %v1404, 1.442695
        %v1443 = vpow.pop %v1442
        %v1444 = vmul.f32 %v1405, 1.442695
        %v1445 = vpow.pop %v1444
        %v1446 = vmul.f32 %v1406, 1.442695
        %v1447 = vpow.pop %v1446
        %v1448 = vmul.f32 %v1407, 1.442695
        %v1449 = vpow.pop %v1448
        %v1450 = vmul.f32 %v1408, 1.442695
        %v1451 = vpow.pop %v1450
        %v1452 = vmul.f32 %v1409, 1.442695
        %v1453 = vpow.pop %v1452
        %v1454 = vmul.f32 %v1410, 1.442695
        %v1455 = vpow.pop %v1454
        %v1456 = vmul.f32 %v1411, 1.442695
        %v1457 = vpow.pop %v1456
        %v1458 = vmul.f32 %v1412, 1.442695
        %v1459 = vpow.pop %v1458
        %v1460 = vmul.f32 %v1413, 1.442695
        %v1461 = vpow.pop %v1460
        %v1462 = vmul.f32 %v1414, 1.442695
        %v1463 = vpow.pop %v1462
        %v1464 = vmul.f32 %v1415, 1.442695
        %v1465 = vpow.pop %v1464
        %v1466 = vmul.f32 %v1416, 1.442695
        %v1467 = vpow.pop %v1466
        %v1468 = vmul.f32 %v1417, 1.442695
        %v1469 = vpow.pop %v1468
        %v1470 = vmul.f32 %v1418, 1.442695
        %v1471 = vpow.pop %v1470
        %v1472 = vmul.f32 %v1419, 1.442695
        %v1473 = vpow.pop %v1472
        %v1474 = vmul.f32 %v1420, 1.442695
        %v1475 = vpow.pop %v1474
        %v1476 = vmul.f32 %v1421, 1.442695
        %v1477 = vpow.pop %v1476
        %v1478 = vmul.f32 %v1422, 1.442695
        %v1479 = vpow.pop %v1478
        %v1480 = vmul.f32 %v1423, 1.442695
        %v1481 = vpow.pop %v1480
        %v1482 = vmul.f32 %v1424, 1.442695
        %v1483 = vpow.pop %v1482
        %v1484 = vmul.f32 %v1425, 1.442695
        %v1485 = vpow.pop %v1484
        %v1486 = vmul.f32 %v1426, 1.442695
        %v1487 = vpow.pop %v1486
        %v1488 = vmul.f32 %v1427, 1.442695
        %v1489 = vpow.pop %v1488
        %v1490 = vmul.f32 %v1428, 1.442695
        %v1491 = vpow.pop %v1490
        %v1492 = vmul.f32 %v1429, 1.442695
        %v1493 = vpow.pop %v1492
        %v1494 = vadd.f32 %v1431, 1.0
        %v1495 = vadd.f32 %v1433, 1.0
        %v1496 = vadd.f32 %v1435, 1.0
        %v1497 = vadd.f32 %v1437, 1.0
        %v1498 = vadd.f32 %v1439, 1.0
        %v1499 = vadd.f32 %v1441, 1.0
        %v1500 = vadd.f32 %v1443, 1.0
        %v1501 = vadd.f32 %v1445, 1.0
        %v1502 = vadd.f32 %v1447, 1.0
        %v1503 = vadd.f32 %v1449, 1.0
        %v1504 = vadd.f32 %v1451, 1.0
        %v1505 = vadd.f32 %v1453, 1.0
        %v1506 = vadd.f32 %v1455, 1.0
        %v1507 = vadd.f32 %v1457, 1.0
        %v1508 = vadd.f32 %v1459, 1.0
        %v1509 = vadd.f32 %v1461, 1.0
        %v1510 = vadd.f32 %v1463, 1.0
        %v1511 = vadd.f32 %v1465, 1.0
        %v1512 = vadd.f32 %v1467, 1.0
        %v1513 = vadd.f32 %v1469, 1.0
        %v1514 = vadd.f32 %v1471, 1.0
        %v1515 = vadd.f32 %v1473, 1.0
        %v1516 = vadd.f32 %v1475, 1.0
        %v1517 = vadd.f32 %v1477, 1.0
        %v1518 = vadd.f32 %v1479, 1.0
        %v1519 = vadd.f32 %v1481, 1.0
        %v1520 = vadd.f32 %v1483, 1.0
        %v1521 = vadd.f32 %v1485, 1.0
        %v1522 = vadd.f32 %v1487, 1.0
        %v1523 = vadd.f32 %v1489, 1.0
        %v1524 = vadd.f32 %v1491, 1.0
        %v1525 = vadd.f32 %v1493, 1.0
        %v1526 = vrcp.pop %v1494
        %v1527 = vrcp.pop %v1495
        %v1528 = vrcp.pop %v1496
        %v1529 = vrcp.pop %v1497
        %v1530 = vrcp.pop %v1498
        %v1531 = vrcp.pop %v1499
        %v1532 = vrcp.pop %v1500
        %v1533 = vrcp.pop %v1501
        %v1534 = vrcp.pop %v1502
        %v1535 = vrcp.pop %v1503
        %v1536 = vrcp.pop %v1504
        %v1537 = vrcp.pop %v1505
        %v1538 = vrcp.pop %v1506
        %v1539 = vrcp.pop %v1507
        %v1540 = vrcp.pop %v1508
        %v1541 = vrcp.pop %v1509
        %v1542 = vrcp.pop %v1510
        %v1543 = vrcp.pop %v1511
        %v1544 = vrcp.pop %v1512
        %v1545 = vrcp.pop %v1513
        %v1546 = vrcp.pop %v1514
        %v1547 = vrcp.pop %v1515
        %v1548 = vrcp.pop %v1516
        %v1549 = vrcp.pop %v1517
        %v1550 = vrcp.pop %v1518
        %v1551 = vrcp.pop %v1519
        %v1552 = vrcp.pop %v1520
        %v1553 = vrcp.pop %v1521
        %v1554 = vrcp.pop %v1522
        %v1555 = vrcp.pop %v1523
        %v1556 = vrcp.pop %v1524
        %v1557 = vrcp.pop %v1525
        %1558 = vst [vmem:[%s427] sm:$0xff] %v1526
        %1559 = vst [vmem:[%s427 + $0x8] sm:$0xff] %v1527
        %1560 = vst [vmem:[%s427 + $0x10] sm:$0xff] %v1528
        %1561 = vst [vmem:[%s427 + $0x18] sm:$0xff] %v1529
        %1562 = vst [vmem:[%s427 + $0x20] sm:$0xff] %v1530
        %1563 = vst [vmem:[%s427 + $0x28] sm:$0xff] %v1531
        %1564 = vst [vmem:[%s427 + $0x30] sm:$0xff] %v1532
        %1565 = vst [vmem:[%s427 + $0x38] sm:$0xff] %v1533
        %1566 = vst [vmem:[%s427 + $0x40] sm:$0xff] %v1534
        %1567 = vst [vmem:[%s427 + $0x48] sm:$0xff] %v1535
        %1568 = vst [vmem:[%s427 + $0x50] sm:$0xff] %v1536
        %1569 = vst [vmem:[%s427 + $0x58] sm:$0xff] %v1537
        %1570 = vst [vmem:[%s427 + $0x60] sm:$0xff] %v1538
        %1571 = vst [vmem:[%s427 + $0x68] sm:$0xff] %v1539
        %1572 = vst [vmem:[%s427 + $0x70] sm:$0xff] %v1540
        %1573 = vst [vmem:[%s427 + $0x78] sm:$0xff] %v1541
        %1574 = vst [vmem:[%s427 + $0x80] sm:$0xff] %v1542
        %1575 = vst [vmem:[%s427 + $0x88] sm:$0xff] %v1543
        %1576 = vst [vmem:[%s427 + $0x90] sm:$0xff] %v1544
        %1577 = vst [vmem:[%s427 + $0x98] sm:$0xff] %v1545
        %1578 = vst [vmem:[%s427 + $0xa0] sm:$0xff] %v1546
        %1579 = vst [vmem:[%s427 + $0xa8] sm:$0xff] %v1547
        %1580 = vst [vmem:[%s427 + $0xb0] sm:$0xff] %v1548
        %1581 = vst [vmem:[%s427 + $0xb8] sm:$0xff] %v1549
        %1582 = vst [vmem:[%s427 + $0xc0] sm:$0xff] %v1550
        %1583 = vst [vmem:[%s427 + $0xc8] sm:$0xff] %v1551
        %1584 = vst [vmem:[%s427 + $0xd0] sm:$0xff] %v1552
        %1585 = vst [vmem:[%s427 + $0xd8] sm:$0xff] %v1553
        %1586 = vst [vmem:[%s427 + $0xe0] sm:$0xff] %v1554
        %1587 = vst [vmem:[%s427 + $0xe8] sm:$0xff] %v1555
        %1588 = vst [vmem:[%s427 + $0xf0] sm:$0xff] %v1556
        %1589 = vst [vmem:[%s427 + $0xf8] sm:$0xff] %v1557
        %s1590 = sand.u32 %s260, 1
        %s1591 = scalar_lea.sflag [#allocation4], %s1590
        %s1592 = sand.u32 %s260, 1
        %s1593 = smul.addr %s1592, 256
        %s1594 = scalar_lea.vmem [#allocation5], %s1593
        %s1595 = sand.u32 %s286, 1
        %s1596 = scalar_lea.sflag [#allocation7], %s1595
        %s1597 = sand.u32 %s286, 1
        %s1598 = smul.addr %s1597, 128
        %s1599 = scalar_lea.vmem [#allocation6], %s1598
        // Predicated region
        $region65: #{tpu_custom_call.1} parent=59 // pred_check
          %p1600 = pneg %p270
        $region66: #{tpu_custom_call.1} parent=59 // pred_check_branch
          %1602 = sbr.rel (%p1600) target = $region68
        $region67: #{tpu_custom_call.1} parent=59 // pred_region
          %s1603 = smul.u32 16, %s32
          %1605 = vsyncadd %s1591, 0
          %s1606 = smul.addr %s1603, 2
          %s1607 = smul.addr %s1606, 8
          %s1608 = scalar_lea.hbm %s10, %s1607
          %s1609 = sshll.u32 %s1594, 4
          %s1610 = int_to_ptr.vmem [resolvable:$true] %s1609
          %s1611 = sshll.u32 %s1608, 4
          %s1612 = int_to_ptr.hbm [resolvable:$true] %s1611
          %1617 = dma.vmem_to_hbm [thread:$0]  %s1610, 4096, %s1612, %s1591, 256, 256, 16
        $region68: #{tpu_custom_call.1} parent=59 // pred_fallthru
          _
        // Predicated region
        $region69: #{tpu_custom_call.1} parent=59 // pred_check
          %p1618 = pneg %p296
        $region70: #{tpu_custom_call.1} parent=59 // pred_check_branch
          %1620 = sbr.rel (%p1618) target = $region72
        $region71: #{tpu_custom_call.1} parent=59 // pred_region
          %s1621 = smul.u32 16, %s32
          %1623 = vsyncadd %s1596, 0
          %s1624 = smul.addr %s1621, 8
          %s1625 = scalar_lea.hbm %s11, %s1624
          %s1626 = sshll.u32 %s1599, 4
          %s1627 = int_to_ptr.vmem [resolvable:$true] %s1626
          %s1628 = sshll.u32 %s1625, 4
          %s1629 = int_to_ptr.hbm [resolvable:$true] %s1628
          %1634 = dma.vmem_to_hbm [thread:$0]  %s1627, 2048, %s1629, %s1596, 128, 128, 8
        $region72: #{tpu_custom_call.1} parent=59 // pred_fallthru
          _
      $region60: #{tpu_custom_call.1} parent=5 // pred_fallthru
        _
      %p1635 = scmp.le.s32.totalorder 2, %s27
      // Predicated region
      $region73: #{tpu_custom_call.1} parent=5 // pred_check
        %p1636 = pneg %p1635
      $region74: #{tpu_custom_call.1} parent=5 // pred_check_branch
        %1638 = sbr.rel (%p1636) target = $region76
      $region75: #{tpu_custom_call.1} parent=5 // pred_region
        %s1639 = ssub.s32 %s27, 2
        // Predicated region
        $region77: #{tpu_custom_call.1} parent=75 // pred_check
          %p1640 = pneg %p276
        $region78: #{tpu_custom_call.1} parent=75 // pred_check_branch
          %1642 = sbr.rel (%p1640) target = $region80
        $region79: #{tpu_custom_call.1} parent=75 // pred_region
          %s1643 = sand.u32 %s261, 1
          %s1644 = scalar_lea.sflag [#allocation4], %s1643
          %s1645 = sand.u32 %s261, 1
          %s1646 = smul.addr %s1645, 256
          %s1647 = scalar_lea.vmem [#allocation5], %s1646
          %1649 = dma.done %s1644, 4096
        $region80: #{tpu_custom_call.1} parent=75 // pred_fallthru
          _
        // Predicated region
        $region81: #{tpu_custom_call.1} parent=75 // pred_check
          %p1650 = pneg %p302
        $region82: #{tpu_custom_call.1} parent=75 // pred_check_branch
          %1652 = sbr.rel (%p1650) target = $region84
        $region83: #{tpu_custom_call.1} parent=75 // pred_region
          %s1653 = sand.u32 %s287, 1
          %s1654 = scalar_lea.sflag [#allocation7], %s1653
          %s1655 = sand.u32 %s287, 1
          %s1656 = smul.addr %s1655, 128
          %s1657 = scalar_lea.vmem [#allocation6], %s1656
          %1659 = dma.done %s1654, 2048
        $region84: #{tpu_custom_call.1} parent=75 // pred_fallthru
          _
      $region76: #{tpu_custom_call.1} parent=5 // pred_fallthru
        _
    $region6: #{tpu_custom_call.1} parent=1 // loop_footer
      %s31 = sadd.s32 1, %s27
    $region7: #{tpu_custom_call.1} parent=1 // loop_footer_branch
      %26 = sbr.rel target = $region3
    $region8: #{tpu_custom_call.1} parent=1 // loop_exit
      _
    %1660 = vsyncpa [#allocation3], 1
    %s1661 = scalar_lea.sflag [#allocation3], 1
    %1662 = vsyncpa %s1661, 1
    %1663 = vsyncpa [#allocation4], 1
    %s1664 = scalar_lea.sflag [#allocation4], 1
    %1665 = vsyncpa %s1664, 1
    %1666 = vsyncpa [#allocation7], 1
    %s1667 = scalar_lea.sflag [#allocation7], 1
    %1668 = vsyncpa %s1667, 1

</llo_original>
